<compile_context>
chip_gen: v6e
topology: v6e:2x2x1
jax: 0.10.0
libtpu: 0.0.40
codegen_flags: <defaults>
</compile_context>

<pallas_src>
import functools

import jax
import jax.numpy as jnp
import numpy as np
from jax.experimental import pallas as pl
from jax.experimental.pallas import tpu as pltpu


def _round_up(x, m):
    return (x + m - 1) // m * m


# ----------------------------------------------------------------------------
# Fused kernel: one grid step == one batch element.
#   Stage 1 (TemporalDeConv1):  relu( (x@W1+b1) * sigmoid(x@W2+b2) + (x@W3+b3) )
#     with W1|W2|W3 concatenated -> one MXU matmul feeds all three branches.
#   Stage 2 (ChebConv + F.relu): node mixing for all K Chebyshev orders is one
#     matmul (K*N, N) @ (N, Dp1); the K Theta_k channel mixes (per time step)
#     are folded into one matmul against a stacked block-diagonal weight.
#   Stage 3 (TemporalDeConv2):  same fused GLU form as stage 1.
# ----------------------------------------------------------------------------
def stconv_fused_kernel(n_nodes, K, dp1, dp2,
                        x_ref, w1_ref, b1_ref, l_ref, wbd_ref, bc_ref,
                        w2_ref, b2_ref, o_ref):
    x = x_ref[0]                                                         # (N, Din) bf16

    # ---- TemporalDeConv1 (GLU-gated transposed temporal conv) ----
    h = jnp.dot(x, w1_ref[...], preferred_element_type=jnp.float32) + b1_ref[...]
    p = h[:, 0 * dp1:1 * dp1]
    q = h[:, 1 * dp1:2 * dp1]
    r = h[:, 2 * dp1:3 * dp1]
    h1 = jnp.maximum(p * jax.nn.sigmoid(q) + r, 0.0).astype(jnp.bfloat16)  # (N, Dp1)

    # ---- ChebConv on every time slice + the decoder's F.relu ----
    # One matmul computes T_k(L_hat) @ X for all K orders at once.
    z = jnp.dot(l_ref[...], h1, preferred_element_type=jnp.float32)        # (K*N, Dp1)
    # Re-stack orders along lanes -> (N, K*Dp1); lane-aligned vreg copies.
    zcat = jnp.concatenate(
        [z[k * n_nodes:(k + 1) * n_nodes] for k in range(K)], axis=1)
    # TODO(synk): at large T1/N exploit the block-diagonal structure of the
    # stacked Theta ( (N*T1, K*H) @ (K*H, H) reformulation ) instead of the
    # mostly-zero (K*Dp1, Dp1) weight; at these sizes the dense form is cheaper
    # than the relayout a transpose would cost.
    hc = jnp.dot(zcat.astype(jnp.bfloat16), wbd_ref[...],
                 preferred_element_type=jnp.float32) + bc_ref[...]
    hc = jnp.maximum(hc, 0.0).astype(jnp.bfloat16)                         # (N, Dp1)

    # ---- TemporalDeConv2 ----
    g = jnp.dot(hc, w2_ref[...], preferred_element_type=jnp.float32) + b2_ref[...]
    p2 = g[:, 0 * dp2:1 * dp2]
    q2 = g[:, 1 * dp2:2 * dp2]
    r2 = g[:, 2 * dp2:3 * dp2]
    o_ref[0] = jnp.maximum(p2 * jax.nn.sigmoid(q2) + r2, 0.0).astype(o_ref.dtype)


def stconv_fused(x2, w1, b1, l_stack, w_bd, bc, w2, b2, dp1, dp2, n_nodes, K):
    """x2: (B, N, T_in*C_in) bf16 -> (B, N, Dp2) f32."""
    B, N, Din = x2.shape

    # vmem_limit derived from the actual block allocations (2x for the default
    # double buffering) + headroom for Mosaic internal scratch; safe on all of
    # v5e / v6e (128 MiB) and v7x (64 MiB).
    blocks = [((1, N, Din), x2.dtype), (w1.shape, w1.dtype), (b1.shape, b1.dtype),
              (l_stack.shape, l_stack.dtype), (w_bd.shape, w_bd.dtype),
              (bc.shape, bc.dtype), (w2.shape, w2.dtype), (b2.shape, b2.dtype),
              ((1, N, dp2), jnp.float32)]
    tot = sum(int(np.prod(s)) * jnp.dtype(d).itemsize for s, d in blocks)
    vmem_limit = int(min(40 * 2**20, max(16 * 2**20, 2 * tot + 4 * 2**20)))
    # TODO(synk): for large weights, give the constant-operand BlockSpecs
    # pipeline_mode=pl.Buffered(1) so they are not double-buffered.

    return pl.pallas_call(
        functools.partial(stconv_fused_kernel, n_nodes, K, dp1, dp2),
        out_shape=jax.ShapeDtypeStruct((B, N, dp2), jnp.float32),
        grid=(B,),
        in_specs=[
            pl.BlockSpec((1, N, Din), lambda b: (b, 0, 0)),
            pl.BlockSpec(w1.shape, lambda b: (0, 0)),
            pl.BlockSpec(b1.shape, lambda b: (0, 0)),
            pl.BlockSpec(l_stack.shape, lambda b: (0, 0)),
            pl.BlockSpec(w_bd.shape, lambda b: (0, 0)),
            pl.BlockSpec(bc.shape, lambda b: (0, 0)),
            pl.BlockSpec(w2.shape, lambda b: (0, 0)),
            pl.BlockSpec(b2.shape, lambda b: (0, 0)),
        ],
        out_specs=pl.BlockSpec((1, N, dp2), lambda b: (b, 0, 0)),
        compiler_params=pltpu.CompilerParams(
            dimension_semantics=("parallel",),
            vmem_limit_bytes=vmem_limit,
        ),
    )(x2, w1, b1, l_stack, w_bd, bc, w2, b2)


# ----------------------------------------------------------------------------
# Host-side parameter construction (deterministic)
# ----------------------------------------------------------------------------
def make_deconv_weight_eff(weight, bias, T_in, stride, padding,
                           rows_pad=None, lane_pad=128):
    """ConvTranspose2d (1,k)/(1,s)/(0,p) along time -> dense matrix
    (rows_pad, Dp) with rows indexed by (t_in, c_in), cols by (t_out, c_out),
    Dp = T_out*C_out rounded up to a lane multiple; plus a matching bias row."""
    weight = np.asarray(weight, np.float32)          # (C_in, C_out, 1, Kt)
    bias = np.asarray(bias, np.float32)              # (C_out,)
    C_in, C_out, _, Kt = weight.shape
    T_out = (T_in - 1) * stride - 2 * padding + Kt
    Dout = T_out * C_out
    Dp = _round_up(Dout, lane_pad)
    rows = T_in * C_in
    rows_pad = rows if rows_pad is None else rows_pad
    w_eff = np.zeros((rows_pad, Dp), np.float32)
    for t_in in range(T_in):
        for kt in range(Kt):
            t_out = t_in * stride + kt - padding
            if 0 <= t_out < T_out:
                w_eff[t_in * C_in:(t_in + 1) * C_in,
                      t_out * C_out:(t_out + 1) * C_out] += weight[:, :, 0, kt]
    b_eff = np.zeros((Dp,), np.float32)
    b_eff[:Dout] = np.tile(bias, T_out)
    # TODO(synk): w_eff is band-sparse (Kt time-blocks per input step); for
    # long sequences tile the contraction over output-time blocks instead.
    return w_eff, b_eff, T_out, Dout, Dp


def scaled_laplacian(edge_index, edge_weight, num_nodes):
    """Dense L_hat = -D^{-1/2} A D^{-1/2} (PyG ChebConv 'sym', lambda_max=2)."""
    A = np.zeros((num_nodes, num_nodes), dtype=np.float32)
    src, dst = np.asarray(edge_index)
    w = np.asarray(edge_weight, dtype=np.float32)
    for s, d, ww in zip(src, dst, w):
        if s != d:                      # no self loops in the demo graph
            A[d, s] += ww
    deg = A.sum(axis=1)
    dinv = np.where(deg > 0, 1.0 / np.sqrt(np.maximum(deg, 1e-12)), 0.0)
    return -(dinv[:, None] * A * dinv[None, :]).astype(np.float32)


def make_cheb_operators(l_hat, w_stack, bias, T1, Dp1):
    """Stacked Chebyshev matrices T_k(L_hat) (K*N, N), the block-diagonal-over-
    time Theta weights stacked over k (K*Dp1, Dp1), and the tiled bias."""
    w_stack = np.asarray(w_stack, np.float32)        # (K, H, H)
    bias = np.asarray(bias, np.float32)              # (H,)
    K, H, _ = w_stack.shape
    N = l_hat.shape[0]
    cheb = [np.eye(N, dtype=np.float32)]
    if K > 1:
        cheb.append(l_hat.copy())
    for _ in range(2, K):
        cheb.append(2.0 * l_hat @ cheb[-1] - cheb[-2])
    l_vstack = np.concatenate(cheb[:K], axis=0)      # (K*N, N)
    w_bd = np.zeros((K * Dp1, Dp1), np.float32)
    for k in range(K):
        for t in range(T1):
            w_bd[k * Dp1 + t * H:k * Dp1 + (t + 1) * H,
                 t * H:(t + 1) * H] = w_stack[k]
    b_t = np.zeros((Dp1,), np.float32)
    b_t[:T1 * H] = np.tile(bias, T1)
    return l_vstack, w_bd, b_t


def init_params(key, N, C_in, hidden, C_out, k1, k2, K, T_in, stride, padding,
                edge_index, edge_weight):
    keys = jax.random.split(key, 10)

    def nrm(k, shape, scale=0.1):
        return np.asarray(scale * jax.random.normal(k, shape, jnp.float32))

    # TemporalDeConv1: three ConvTranspose2d(C_in, hidden, (1,k1), (1,stride), (0,padding))
    eff1 = []
    for i in range(3):
        w = nrm(keys[i], (C_in, hidden, 1, k1))
        b = nrm(jax.random.fold_in(keys[i], 7), (hidden,))
        eff1.append(make_deconv_weight_eff(w, b, T_in, stride, padding))
    T1, D1, Dp1 = eff1[0][2], eff1[0][3], eff1[0][4]
    w1 = jnp.asarray(np.concatenate([e[0] for e in eff1], axis=1), jnp.bfloat16)
    b1 = jnp.asarray(np.concatenate([e[1] for e in eff1])[None, :], jnp.float32)

    # ChebConv(hidden, hidden, K)
    cheb_w = nrm(keys[3], (K, hidden, hidden))
    cheb_b = nrm(keys[4], (hidden,))
    l_hat = scaled_laplacian(edge_index, edge_weight, N)
    l_vstack, w_bd, bc = make_cheb_operators(l_hat, cheb_w, cheb_b, T1, Dp1)
    cheb_l = jnp.asarray(l_vstack, jnp.bfloat16)
    cheb_wbd = jnp.asarray(w_bd, jnp.bfloat16)
    cheb_bt = jnp.asarray(bc[None, :], jnp.float32)

    # TemporalDeConv2: three ConvTranspose2d(hidden, C_out, (1,k2), (1,stride)), padding 0
    eff2 = []
    for i in range(3):
        w = nrm(keys[5 + i], (hidden, C_out, 1, k2))
        b = nrm(jax.random.fold_in(keys[5 + i], 7), (C_out,))
        eff2.append(make_deconv_weight_eff(w, b, T1, stride, 0, rows_pad=Dp1))
    T2, D2, Dp2 = eff2[0][2], eff2[0][3], eff2[0][4]
    w2 = jnp.asarray(np.concatenate([e[0] for e in eff2], axis=1), jnp.bfloat16)
    b2 = jnp.asarray(np.concatenate([e[1] for e in eff2])[None, :], jnp.float32)

    return dict(w1=w1, b1=b1, cheb_l=cheb_l, cheb_wbd=cheb_wbd, cheb_bt=cheb_bt,
                w2=w2, b2=b2,
                T1=T1, T2=T2, D1=D1, D2=D2, Dp1=Dp1, Dp2=Dp2,
                hidden=hidden, out_channels=C_out, K=K)


# ----------------------------------------------------------------------------
# Forward orchestration: single (b,n)-rows x (t,c)-cols layout end-to-end;
# only the unavoidable boundary permutes at module input/output remain.
# ----------------------------------------------------------------------------
def stconv_decoder_forward(params, X):
    B, T_in, N, C_in = X.shape
    T2, C_out = params["T2"], params["out_channels"]
    D2, Dp1, Dp2 = params["D2"], params["Dp1"], params["Dp2"]
    K = params["K"]

    # Module boundary: (B, T_in, N, C_in) -> per-batch (N, T_in*C_in) slabs.
    x2 = jnp.transpose(X, (0, 2, 1, 3)).reshape(B, N, T_in * C_in).astype(jnp.bfloat16)

    out_p = stconv_fused(x2, params["w1"], params["b1"],
                         params["cheb_l"], params["cheb_wbd"], params["cheb_bt"],
                         params["w2"], params["b2"],
                         Dp1, Dp2, N, K)                                  # (B, N, Dp2)

    out = out_p[:, :, :D2].reshape(B, N, T2, C_out).transpose(0, 2, 1, 3)  # (B, T2, N, C_out)
    return out


# ----------------------------------------------------------------------------
if __name__ == "__main__":
    B, T_in, N = 2, 8, 16
    C_in, hidden, C_out = 4, 32, 8
    kernel_size, kernel_size_de = 3, 3
    stride, padding, K = 1, 1, 3

    key = jax.random.PRNGKey(0)
    kx, kp = jax.random.split(key)

    X = jax.random.normal(kx, (B, T_in, N, C_in), jnp.float32)

    # Deterministic ring graph (undirected), unit edge weights.
    src = np.arange(N)
    dst = (src + 1) % N
    edge_index = np.stack([np.concatenate([src, dst]),
                           np.concatenate([dst, src])]).astype(np.int64)
    edge_weight = np.ones(edge_index.shape[1], np.float32)

    params = init_params(kp, N, C_in, hidden, C_out,
                         kernel_size, kernel_size_de, K, T_in, stride, padding,
                         edge_index, edge_weight)

    fwd = jax.jit(lambda x: stconv_decoder_forward(params, x))
    out = jax.block_until_ready(fwd(X))

    T1 = (T_in - 1) * stride - 2 * padding + kernel_size
    T2 = (T1 - 1) * stride + kernel_size_de
    assert out.shape == (B, T2, N, C_out), out.shape
    assert bool(jnp.all(jnp.isfinite(out)))
    print("KERNEL_OK")
</pallas_src>

<mosaic_0001>
module attributes {stable_mosaic.version = 11 : i64} {
  func.func @stconv_fused_kernel(%arg0: i32, %arg1: memref<1x16x32xbf16, #tpu.memory_space<vmem>>, %arg2: memref<32x768xbf16, #tpu.memory_space<vmem>>, %arg3: memref<1x768xf32, #tpu.memory_space<vmem>>, %arg4: memref<48x16xbf16, #tpu.memory_space<vmem>>, %arg5: memref<768x256xbf16, #tpu.memory_space<vmem>>, %arg6: memref<1x256xf32, #tpu.memory_space<vmem>>, %arg7: memref<256x384xbf16, #tpu.memory_space<vmem>>, %arg8: memref<1x384xf32, #tpu.memory_space<vmem>>, %arg9: memref<1x16x128xf32, #tpu.memory_space<vmem>>) attributes {dimension_semantics = [#tpu.dimension_semantics<parallel>], iteration_bounds = array<i64: 2>, scalar_prefetch = 0 : i64, scratch_operands = 0 : i64, tpu.core_type = #tpu.core_type<tc>, window_params = [{transform_indices = @transform_0, window_bounds = array<i64: 1, 16, 32>}, {pipeline_mode = #tpu.pipeline_mode<synchronous>, transform_indices = @transform_1, window_bounds = array<i64: 32, 768>}, {pipeline_mode = #tpu.pipeline_mode<synchronous>, transform_indices = @transform_2, window_bounds = array<i64: 1, 768>}, {pipeline_mode = #tpu.pipeline_mode<synchronous>, transform_indices = @transform_3, window_bounds = array<i64: 48, 16>}, {pipeline_mode = #tpu.pipeline_mode<synchronous>, transform_indices = @transform_4, window_bounds = array<i64: 768, 256>}, {pipeline_mode = #tpu.pipeline_mode<synchronous>, transform_indices = @transform_5, window_bounds = array<i64: 1, 256>}, {pipeline_mode = #tpu.pipeline_mode<synchronous>, transform_indices = @transform_6, window_bounds = array<i64: 256, 384>}, {pipeline_mode = #tpu.pipeline_mode<synchronous>, transform_indices = @transform_7, window_bounds = array<i64: 1, 384>}, {transform_indices = @transform_8, window_bounds = array<i64: 1, 16, 128>}]} {
    %c0 = arith.constant 0 : index
    %c0_0 = arith.constant 0 : index
    %c0_1 = arith.constant 0 : index
    %0 = vector.load %arg1[%c0, %c0_0, %c0_1] : memref<1x16x32xbf16, #tpu.memory_space<vmem>>, vector<1x16x32xbf16>
    %1 = vector.shape_cast %0 : vector<1x16x32xbf16> to vector<16x32xbf16>
    %c0_2 = arith.constant 0 : index
    %c0_3 = arith.constant 0 : index
    %2 = vector.load %arg2[%c0_2, %c0_3] : memref<32x768xbf16, #tpu.memory_space<vmem>>, vector<32x768xbf16>
    %cst = arith.constant dense<0.000000e+00> : vector<16x768xf32>
    %3 = tpu.matmul %1, %2, %cst {dimension_numbers = #tpu.dot_dimension_numbers<[1], [0], [0], [1], [0, 0, 1, 1], [], []>} : vector<16x32xbf16>, vector<32x768xbf16>, vector<16x768xf32> -> vector<16x768xf32>
    %c0_4 = arith.constant 0 : index
    %c0_5 = arith.constant 0 : index
    %4 = vector.load %arg3[%c0_4, %c0_5] : memref<1x768xf32, #tpu.memory_space<vmem>>, vector<1x768xf32>
    %5 = vector.broadcast %4 : vector<1x768xf32> to vector<16x768xf32>
    %6 = arith.addf %3, %5 : vector<16x768xf32>
    %7 = vector.extract_strided_slice %6 {offsets = [0, 0], sizes = [16, 256], strides = [1, 1]} : vector<16x768xf32> to vector<16x256xf32>
    %8 = vector.extract_strided_slice %6 {offsets = [0, 256], sizes = [16, 256], strides = [1, 1]} : vector<16x768xf32> to vector<16x256xf32>
    %9 = vector.extract_strided_slice %6 {offsets = [0, 512], sizes = [16, 256], strides = [1, 1]} : vector<16x768xf32> to vector<16x256xf32>
    %10 = arith.negf %8 : vector<16x256xf32>
    %11 = math.exp %10 : vector<16x256xf32>
    %cst_6 = arith.constant 1.000000e+00 : f32
    %12 = vector.broadcast %cst_6 : f32 to vector<16x256xf32>
    %13 = arith.addf %12, %11 : vector<16x256xf32>
    %14 = arith.divf %12, %13 : vector<16x256xf32>
    %15 = arith.mulf %7, %14 : vector<16x256xf32>
    %16 = arith.addf %15, %9 : vector<16x256xf32>
    %cst_7 = arith.constant 0.000000e+00 : f32
    %17 = vector.broadcast %cst_7 : f32 to vector<16x256xf32>
    %18 = arith.maximumf %16, %17 : vector<16x256xf32>
    %19 = arith.truncf %18 : vector<16x256xf32> to vector<16x256xbf16>
    %c0_8 = arith.constant 0 : index
    %c0_9 = arith.constant 0 : index
    %20 = vector.load %arg4[%c0_8, %c0_9] : memref<48x16xbf16, #tpu.memory_space<vmem>>, vector<48x16xbf16>
    %cst_10 = arith.constant dense<0.000000e+00> : vector<48x256xf32>
    %21 = tpu.matmul %20, %19, %cst_10 {dimension_numbers = #tpu.dot_dimension_numbers<[1], [0], [0], [1], [0, 0, 1, 1], [], []>} : vector<48x16xbf16>, vector<16x256xbf16>, vector<48x256xf32> -> vector<48x256xf32>
    %22 = vector.extract_strided_slice %21 {offsets = [0, 0], sizes = [16, 256], strides = [1, 1]} : vector<48x256xf32> to vector<16x256xf32>
    %23 = vector.extract_strided_slice %21 {offsets = [16, 0], sizes = [16, 256], strides = [1, 1]} : vector<48x256xf32> to vector<16x256xf32>
    %24 = vector.extract_strided_slice %21 {offsets = [32, 0], sizes = [16, 256], strides = [1, 1]} : vector<48x256xf32> to vector<16x256xf32>
    %25 = tpu.concatenate %22, %23, %24 in 1 : vector<16x256xf32>, vector<16x256xf32>, vector<16x256xf32> -> vector<16x768xf32>
    %26 = arith.truncf %25 : vector<16x768xf32> to vector<16x768xbf16>
    %c0_11 = arith.constant 0 : index
    %c0_12 = arith.constant 0 : index
    %27 = vector.load %arg5[%c0_11, %c0_12] : memref<768x256xbf16, #tpu.memory_space<vmem>>, vector<768x256xbf16>
    %cst_13 = arith.constant dense<0.000000e+00> : vector<16x256xf32>
    %28 = tpu.matmul %26, %27, %cst_13 {dimension_numbers = #tpu.dot_dimension_numbers<[1], [0], [0], [1], [0, 0, 1, 1], [], []>} : vector<16x768xbf16>, vector<768x256xbf16>, vector<16x256xf32> -> vector<16x256xf32>
    %c0_14 = arith.constant 0 : index
    %c0_15 = arith.constant 0 : index
    %29 = vector.load %arg6[%c0_14, %c0_15] : memref<1x256xf32, #tpu.memory_space<vmem>>, vector<1x256xf32>
    %30 = vector.broadcast %29 : vector<1x256xf32> to vector<16x256xf32>
    %31 = arith.addf %28, %30 : vector<16x256xf32>
    %cst_16 = arith.constant 0.000000e+00 : f32
    %32 = vector.broadcast %cst_16 : f32 to vector<16x256xf32>
    %33 = arith.maximumf %31, %32 : vector<16x256xf32>
    %34 = arith.truncf %33 : vector<16x256xf32> to vector<16x256xbf16>
    %c0_17 = arith.constant 0 : index
    %c0_18 = arith.constant 0 : index
    %35 = vector.load %arg7[%c0_17, %c0_18] : memref<256x384xbf16, #tpu.memory_space<vmem>>, vector<256x384xbf16>
    %cst_19 = arith.constant dense<0.000000e+00> : vector<16x384xf32>
    %36 = tpu.matmul %34, %35, %cst_19 {dimension_numbers = #tpu.dot_dimension_numbers<[1], [0], [0], [1], [0, 0, 1, 1], [], []>} : vector<16x256xbf16>, vector<256x384xbf16>, vector<16x384xf32> -> vector<16x384xf32>
    %c0_20 = arith.constant 0 : index
    %c0_21 = arith.constant 0 : index
    %37 = vector.load %arg8[%c0_20, %c0_21] : memref<1x384xf32, #tpu.memory_space<vmem>>, vector<1x384xf32>
    %38 = vector.broadcast %37 : vector<1x384xf32> to vector<16x384xf32>
    %39 = arith.addf %36, %38 : vector<16x384xf32>
    %40 = vector.extract_strided_slice %39 {offsets = [0, 0], sizes = [16, 128], strides = [1, 1]} : vector<16x384xf32> to vector<16x128xf32>
    %41 = vector.extract_strided_slice %39 {offsets = [0, 128], sizes = [16, 128], strides = [1, 1]} : vector<16x384xf32> to vector<16x128xf32>
    %42 = vector.extract_strided_slice %39 {offsets = [0, 256], sizes = [16, 128], strides = [1, 1]} : vector<16x384xf32> to vector<16x128xf32>
    %43 = arith.negf %41 : vector<16x128xf32>
    %44 = math.exp %43 : vector<16x128xf32>
    %cst_22 = arith.constant 1.000000e+00 : f32
    %45 = vector.broadcast %cst_22 : f32 to vector<16x128xf32>
    %46 = arith.addf %45, %44 : vector<16x128xf32>
    %47 = arith.divf %45, %46 : vector<16x128xf32>
    %48 = arith.mulf %40, %47 : vector<16x128xf32>
    %49 = arith.addf %48, %42 : vector<16x128xf32>
    %cst_23 = arith.constant 0.000000e+00 : f32
    %50 = vector.broadcast %cst_23 : f32 to vector<16x128xf32>
    %51 = arith.maximumf %49, %50 : vector<16x128xf32>
    %c0_24 = arith.constant 0 : index
    %c0_25 = arith.constant 0 : index
    %c0_26 = arith.constant 0 : index
    %52 = vector.load %arg9[%c0_24, %c0_25, %c0_26] : memref<1x16x128xf32, #tpu.memory_space<vmem>>, vector<1x16x128xf32>
    %53 = vector.shape_cast %52 : vector<1x16x128xf32> to vector<16x128xf32>
    %54 = vector.shape_cast %51 : vector<16x128xf32> to vector<1x16x128xf32>
    tpu.vector_store %arg9[%c0_24, %c0_25, %c0_26], %54 {strides = array<i32>} : memref<1x16x128xf32, #tpu.memory_space<vmem>>, vector<1x16x128xf32>,
    return
  }
  func.func @transform_0(%arg0: i32) -> (i32, i32, i32) {
    %c0_i32 = arith.constant 0 : i32
    %c0_i32_0 = arith.constant 0 : i32
    %c0_i32_1 = arith.constant 0 : i32
    return %arg0, %c0_i32, %c0_i32_0 : i32, i32, i32
  }
  func.func @transform_1(%arg0: i32) -> (i32, i32) {
    %c0_i32 = arith.constant 0 : i32
    %c0_i32_0 = arith.constant 0 : i32
    %c0_i32_1 = arith.constant 0 : i32
    return %c0_i32, %c0_i32_0 : i32, i32
  }
  func.func @transform_2(%arg0: i32) -> (i32, i32) {
    %c0_i32 = arith.constant 0 : i32
    %c0_i32_0 = arith.constant 0 : i32
    %c0_i32_1 = arith.constant 0 : i32
    return %c0_i32, %c0_i32_0 : i32, i32
  }
  func.func @transform_3(%arg0: i32) -> (i32, i32) {
    %c0_i32 = arith.constant 0 : i32
    %c0_i32_0 = arith.constant 0 : i32
    %c0_i32_1 = arith.constant 0 : i32
    return %c0_i32, %c0_i32_0 : i32, i32
  }
  func.func @transform_4(%arg0: i32) -> (i32, i32) {
    %c0_i32 = arith.constant 0 : i32
    %c0_i32_0 = arith.constant 0 : i32
    %c0_i32_1 = arith.constant 0 : i32
    return %c0_i32, %c0_i32_0 : i32, i32
  }
  func.func @transform_5(%arg0: i32) -> (i32, i32) {
    %c0_i32 = arith.constant 0 : i32
    %c0_i32_0 = arith.constant 0 : i32
    %c0_i32_1 = arith.constant 0 : i32
    return %c0_i32, %c0_i32_0 : i32, i32
  }
  func.func @transform_6(%arg0: i32) -> (i32, i32) {
    %c0_i32 = arith.constant 0 : i32
    %c0_i32_0 = arith.constant 0 : i32
    %c0_i32_1 = arith.constant 0 : i32
    return %c0_i32, %c0_i32_0 : i32, i32
  }
  func.func @transform_7(%arg0: i32) -> (i32, i32) {
    %c0_i32 = arith.constant 0 : i32
    %c0_i32_0 = arith.constant 0 : i32
    %c0_i32_1 = arith.constant 0 : i32
    return %c0_i32, %c0_i32_0 : i32, i32
  }
  func.func @transform_8(%arg0: i32) -> (i32, i32, i32) {
    %c0_i32 = arith.constant 0 : i32
    %c0_i32_0 = arith.constant 0 : i32
    %c0_i32_1 = arith.constant 0 : i32
    return %arg0, %c0_i32, %c0_i32_0 : i32, i32, i32
  }
}

</mosaic_0001>

<llo_original>
// kernel: _lambda_.1
$region0: #{_lambda_.1}
  #allocation0 [shape = 'u32[]', space=smem, size = 0x4, offset = 0x4, fixed_abs, tag = 'smem constant byte address 0x4 - core index']
  #allocation1 [shape = 'u32[144,128]{1,0:T(1,128)}', space=vmem, size = 0x12000, scoped, tag = 'internal scratch']
  %s0 = inlined_call_operand.vmem [shape: bf16[2,16,32], index: 0, kind: input, shape index: {}]
  %s1 = inlined_call_operand.vmem [shape: bf16[32,768], index: 1, kind: input, shape index: {}]
  %s2 = inlined_call_operand.vmem [shape: f32[1,768], index: 2, kind: input, shape index: {}]
  %s3 = inlined_call_operand.vmem [shape: bf16[48,16], index: 3, kind: input, shape index: {}]
  %s4 = inlined_call_operand.hbm [shape: bf16[768,256], index: 4, kind: input, shape index: {}]
  %s5 = inlined_call_operand.vmem [shape: f32[1,256], index: 5, kind: input, shape index: {}]
  %s6 = inlined_call_operand.hbm [shape: bf16[256,384], index: 6, kind: input, shape index: {}]
  %s7 = inlined_call_operand.vmem [shape: f32[1,384], index: 7, kind: input, shape index: {}]
  %s8 = inlined_call_operand.vmem [shape: f32[2,16,128], index: 8, kind: output, shape index: {}]
  %s9 = sld [smem:[#allocation0]]
  $region73: #{_lambda_.1} parent=0
    _
  %s11 = ssub.s32 1, %s9
  %s12 = scalar_select 0, %s11, %s9
  $region1: #{_lambda_.1} parent=0
    #allocation2 [shape = 'u8[393216]{0}', space=vmem, size = 0x60000, scoped, tag = 'input window, operand 4, single buffered']
    #allocation3 [shape = 's32[2]{0}', space=sflag, size = 0x8, scoped, tag = 'scoped memory for _lambda_.1']
    #allocation4 [shape = 'u8[196608]{0}', space=vmem, size = 0x30000, scoped, tag = 'input window, operand 6, single buffered']
    #allocation5 [shape = 's32[1]{0}', space=sflag, size = 0x4, scoped, tag = 'scoped memory for _lambda_.1']
    %13 = vsyncpa [#allocation3], 0
    %14 = vsyncpa [#allocation5], 0
    loop: start=0, step=1, limit=4
    $region2: #{_lambda_.1} parent=1 // loop_pre_header
      _
    $region3: #{_lambda_.1} parent=1 // loop_header
      %s16 = sphi 0, %s20
      %p17 = scmp.ge.s32.totalorder %s16, 4
      %s26 = sphi 0, %s28
      %s29 = sphi 0, %s26
      %s30 = sphi 0, %s29
      %s46 = sphi 0, %s30
      %s50 = sphi 0, %s50
      %s52 = sphi 0, %s50
      %s53 = sphi 0, %s52
      %s67 = sphi 0, %s53
      %s71 = sphi 0, %s71
      %s73 = sphi 0, %s71
      %s74 = sphi 0, %s73
      %s88 = sphi 0, %s74
      %s92 = sphi 0, %s92
      %s94 = sphi 0, %s92
      %s95 = sphi 0, %s94
      %s109 = sphi 0, %s95
      %s113 = sphi 0, %s113
      %s115 = sphi 0, %s113
      %s116 = sphi 0, %s115
      %s130 = sphi 0, %s116
      %s134 = sphi 0, %s134
      %s136 = sphi 0, %s134
      %s137 = sphi 0, %s136
      %s151 = sphi 0, %s137
      %s155 = sphi 0, %s155
      %s157 = sphi 0, %s155
      %s158 = sphi 0, %s157
      %s172 = sphi 0, %s158
      %s176 = sphi 0, %s176
      %s178 = sphi 0, %s176
      %s179 = sphi 0, %s178
      %s193 = sphi 0, %s179
      %s199 = sphi 0, %s201
      %s202 = sphi 0, %s199
      %s203 = sphi 0, %s202
      %s219 = sphi 0, %s203
    $region4: #{_lambda_.1} parent=1 // loop_header_branch
      %19 = sbr.rel (%p17) target = $region8
    $region5: #{_lambda_.1} parent=1 // loop_body
      %s21 = ssub.s32 %s16, 1
      %s22 = ssub.s32 %s16, 2
      %s23 = sadd.s32 %s16, 1
      %s24 = ssub.s32 %s16, %s23
      %p25 = scmp.eq.s32.totalorder %s24, 0
      %s27 = sadd.s32 %s26, 1
      %s28 = scalar_select %p25, %s26, %s27
      %p31 = pneg %p25
      %p32 = scmp.eq.s32.totalorder %s16, 1
      %p33 = por %p31, %p32
      %p34 = scmp.ne.s32.totalorder %s26, %s29
      %p35 = scmp.eq.s32.totalorder %s16, 0
      %p36 = por %p34, %p35
      %p37 = scmp.ne.s32.totalorder %s26, %s29
      %p38 = scmp.eq.s32.totalorder %s21, 1
      %p39 = por %p37, %p38
      %p40 = scmp.ne.s32.totalorder %s29, %s30
      %p41 = scmp.eq.s32.totalorder %s21, 0
      %p42 = por %p40, %p41
      %p43 = scmp.ne.s32.totalorder %s29, %s30
      %p44 = scmp.eq.s32.totalorder %s22, 1
      %p45 = por %p43, %p44
      %p47 = scmp.ne.s32.totalorder %s30, %s46
      %p48 = scmp.eq.s32.totalorder %s22, 0
      %p49 = por %p47, %p48
      %s51 = sadd.s32 %s50, 1
      %p54 = scmp.eq.s32.totalorder %s16, 1
      %p55 = scmp.ne.s32.totalorder %s50, %s52
      %p56 = scmp.eq.s32.totalorder %s16, 0
      %p57 = por %p55, %p56
      %p58 = scmp.ne.s32.totalorder %s50, %s52
      %p59 = scmp.eq.s32.totalorder %s21, 1
      %p60 = por %p58, %p59
      %p61 = scmp.ne.s32.totalorder %s52, %s53
      %p62 = scmp.eq.s32.totalorder %s21, 0
      %p63 = por %p61, %p62
      %p64 = scmp.ne.s32.totalorder %s52, %s53
      %p65 = scmp.eq.s32.totalorder %s22, 1
      %p66 = por %p64, %p65
      %p68 = scmp.ne.s32.totalorder %s53, %s67
      %p69 = scmp.eq.s32.totalorder %s22, 0
      %p70 = por %p68, %p69
      %s72 = sadd.s32 %s71, 1
      %p75 = scmp.eq.s32.totalorder %s16, 1
      %p76 = scmp.ne.s32.totalorder %s71, %s73
      %p77 = scmp.eq.s32.totalorder %s16, 0
      %p78 = por %p76, %p77
      %p79 = scmp.ne.s32.totalorder %s71, %s73
      %p80 = scmp.eq.s32.totalorder %s21, 1
      %p81 = por %p79, %p80
      %p82 = scmp.ne.s32.totalorder %s73, %s74
      %p83 = scmp.eq.s32.totalorder %s21, 0
      %p84 = por %p82, %p83
      %p85 = scmp.ne.s32.totalorder %s73, %s74
      %p86 = scmp.eq.s32.totalorder %s22, 1
      %p87 = por %p85, %p86
      %p89 = scmp.ne.s32.totalorder %s74, %s88
      %p90 = scmp.eq.s32.totalorder %s22, 0
      %p91 = por %p89, %p90
      %s93 = sadd.s32 %s92, 1
      %p96 = scmp.eq.s32.totalorder %s16, 1
      %p97 = scmp.ne.s32.totalorder %s92, %s94
      %p98 = scmp.eq.s32.totalorder %s16, 0
      %p99 = por %p97, %p98
      %p100 = scmp.ne.s32.totalorder %s92, %s94
      %p101 = scmp.eq.s32.totalorder %s21, 1
      %p102 = por %p100, %p101
      %p103 = scmp.ne.s32.totalorder %s94, %s95
      %p104 = scmp.eq.s32.totalorder %s21, 0
      %p105 = por %p103, %p104
      %p106 = scmp.ne.s32.totalorder %s94, %s95
      %p107 = scmp.eq.s32.totalorder %s22, 1
      %p108 = por %p106, %p107
      %p110 = scmp.ne.s32.totalorder %s95, %s109
      %p111 = scmp.eq.s32.totalorder %s22, 0
      %p112 = por %p110, %p111
      %s114 = sadd.s32 %s113, 1
      %p117 = scmp.eq.s32.totalorder %s16, 1
      %p118 = scmp.ne.s32.totalorder %s113, %s115
      %p119 = scmp.eq.s32.totalorder %s16, 0
      %p120 = por %p118, %p119
      %p121 = scmp.ne.s32.totalorder %s113, %s115
      %p122 = scmp.eq.s32.totalorder %s21, 1
      %p123 = por %p121, %p122
      %p124 = scmp.ne.s32.totalorder %s115, %s116
      %p125 = scmp.eq.s32.totalorder %s21, 0
      %p126 = por %p124, %p125
      %p127 = scmp.ne.s32.totalorder %s115, %s116
      %p128 = scmp.eq.s32.totalorder %s22, 1
      %p129 = por %p127, %p128
      %p131 = scmp.ne.s32.totalorder %s116, %s130
      %p132 = scmp.eq.s32.totalorder %s22, 0
      %p133 = por %p131, %p132
      %s135 = sadd.s32 %s134, 1
      %p138 = scmp.eq.s32.totalorder %s16, 1
      %p139 = scmp.ne.s32.totalorder %s134, %s136
      %p140 = scmp.eq.s32.totalorder %s16, 0
      %p141 = por %p139, %p140
      %p142 = scmp.ne.s32.totalorder %s134, %s136
      %p143 = scmp.eq.s32.totalorder %s21, 1
      %p144 = por %p142, %p143
      %p145 = scmp.ne.s32.totalorder %s136, %s137
      %p146 = scmp.eq.s32.totalorder %s21, 0
      %p147 = por %p145, %p146
      %p148 = scmp.ne.s32.totalorder %s136, %s137
      %p149 = scmp.eq.s32.totalorder %s22, 1
      %p150 = por %p148, %p149
      %p152 = scmp.ne.s32.totalorder %s137, %s151
      %p153 = scmp.eq.s32.totalorder %s22, 0
      %p154 = por %p152, %p153
      %s156 = sadd.s32 %s155, 1
      %p159 = scmp.eq.s32.totalorder %s16, 1
      %p160 = scmp.ne.s32.totalorder %s155, %s157
      %p161 = scmp.eq.s32.totalorder %s16, 0
      %p162 = por %p160, %p161
      %p163 = scmp.ne.s32.totalorder %s155, %s157
      %p164 = scmp.eq.s32.totalorder %s21, 1
      %p165 = por %p163, %p164
      %p166 = scmp.ne.s32.totalorder %s157, %s158
      %p167 = scmp.eq.s32.totalorder %s21, 0
      %p168 = por %p166, %p167
      %p169 = scmp.ne.s32.totalorder %s157, %s158
      %p170 = scmp.eq.s32.totalorder %s22, 1
      %p171 = por %p169, %p170
      %p173 = scmp.ne.s32.totalorder %s158, %s172
      %p174 = scmp.eq.s32.totalorder %s22, 0
      %p175 = por %p173, %p174
      %s177 = sadd.s32 %s176, 1
      %p180 = scmp.eq.s32.totalorder %s16, 1
      %p181 = scmp.ne.s32.totalorder %s176, %s178
      %p182 = scmp.eq.s32.totalorder %s16, 0
      %p183 = por %p181, %p182
      %p184 = scmp.ne.s32.totalorder %s176, %s178
      %p185 = scmp.eq.s32.totalorder %s21, 1
      %p186 = por %p184, %p185
      %p187 = scmp.ne.s32.totalorder %s178, %s179
      %p188 = scmp.eq.s32.totalorder %s21, 0
      %p189 = por %p187, %p188
      %p190 = scmp.ne.s32.totalorder %s178, %s179
      %p191 = scmp.eq.s32.totalorder %s22, 1
      %p192 = por %p190, %p191
      %p194 = scmp.ne.s32.totalorder %s179, %s193
      %p195 = scmp.eq.s32.totalorder %s22, 0
      %p196 = por %p194, %p195
      %s197 = ssub.s32 %s16, %s23
      %p198 = scmp.eq.s32.totalorder %s197, 0
      %s200 = sadd.s32 %s199, 1
      %s201 = scalar_select %p198, %s199, %s200
      %p204 = pneg %p198
      %p205 = scmp.eq.s32.totalorder %s16, 1
      %p206 = por %p204, %p205
      %p207 = scmp.ne.s32.totalorder %s199, %s202
      %p208 = scmp.eq.s32.totalorder %s16, 0
      %p209 = por %p207, %p208
      %p210 = scmp.ne.s32.totalorder %s199, %s202
      %p211 = scmp.eq.s32.totalorder %s21, 1
      %p212 = por %p210, %p211
      %p213 = scmp.ne.s32.totalorder %s202, %s203
      %p214 = scmp.eq.s32.totalorder %s21, 0
      %p215 = por %p213, %p214
      %p216 = scmp.ne.s32.totalorder %s202, %s203
      %p217 = scmp.eq.s32.totalorder %s22, 1
      %p218 = por %p216, %p217
      %p220 = scmp.ne.s32.totalorder %s203, %s219
      %p221 = scmp.eq.s32.totalorder %s22, 0
      %p222 = por %p220, %p221
      %p223 = scmp.le.s32.totalorder 1, %s16
      %p224 = scmp.lt.s32.totalorder %s16, 3
      %p225 = pnand %p223, %p224
      %p226 = pneg %p225
      // Predicated region
      $region9: #{_lambda_.1} parent=5 // pred_check
        _
      $region10: #{_lambda_.1} parent=5 // pred_check_branch
        %228 = sbr.rel (%p225) target = $region12
      $region11: #{_lambda_.1} parent=5 // pred_region
        %s229 = ssub.s32 %s16, 1
        // Predicated region
        $region13: #{_lambda_.1} parent=11 // pred_check
          %p230 = pneg %p63
        $region14: #{_lambda_.1} parent=11 // pred_check_branch
          %232 = sbr.rel (%p230) target = $region16
        $region15: #{_lambda_.1} parent=11 // pred_region
          _
        $region16: #{_lambda_.1} parent=11 // pred_fallthru
          _
        // Predicated region
        $region17: #{_lambda_.1} parent=11 // pred_check
          %p233 = pneg %p84
        $region18: #{_lambda_.1} parent=11 // pred_check_branch
          %235 = sbr.rel (%p233) target = $region20
        $region19: #{_lambda_.1} parent=11 // pred_region
          _
        $region20: #{_lambda_.1} parent=11 // pred_fallthru
          _
        // Predicated region
        $region21: #{_lambda_.1} parent=11 // pred_check
          %p236 = pneg %p105
        $region22: #{_lambda_.1} parent=11 // pred_check_branch
          %238 = sbr.rel (%p236) target = $region24
        $region23: #{_lambda_.1} parent=11 // pred_region
          _
        $region24: #{_lambda_.1} parent=11 // pred_fallthru
          _
        // Predicated region
        $region25: #{_lambda_.1} parent=11 // pred_check
          %p239 = pneg %p126
        $region26: #{_lambda_.1} parent=11 // pred_check_branch
          %241 = sbr.rel (%p239) target = $region28
        $region27: #{_lambda_.1} parent=11 // pred_region
          %s243 = ssub.s32 12288, 12288
          %244 = vsyncadd [#allocation3], %s243
          %s245 = sshll.u32 [#allocation2], 4
          %s246 = int_to_ptr.vmem [resolvable:$true] %s245
          %251 = dma.hbm_to_vmem [thread:$0]  %s4, 12288, %s246, [#allocation3], 128, 128, 8
        $region28: #{_lambda_.1} parent=11 // pred_fallthru
          _
        // Predicated region
        $region29: #{_lambda_.1} parent=11 // pred_check
          %p252 = pneg %p147
        $region30: #{_lambda_.1} parent=11 // pred_check_branch
          %254 = sbr.rel (%p252) target = $region32
        $region31: #{_lambda_.1} parent=11 // pred_region
          _
        $region32: #{_lambda_.1} parent=11 // pred_fallthru
          _
        // Predicated region
        $region33: #{_lambda_.1} parent=11 // pred_check
          %p255 = pneg %p168
        $region34: #{_lambda_.1} parent=11 // pred_check_branch
          %257 = sbr.rel (%p255) target = $region36
        $region35: #{_lambda_.1} parent=11 // pred_region
          %s259 = ssub.s32 6144, 6144
          %260 = vsyncadd [#allocation5], %s259
          %s261 = sshll.u32 [#allocation4], 4
          %s262 = int_to_ptr.vmem [resolvable:$true] %s261
          %267 = dma.hbm_to_vmem [thread:$0]  %s6, 6144, %s262, [#allocation5], 192, 192, 12
        $region36: #{_lambda_.1} parent=11 // pred_fallthru
          _
        // Predicated region
        $region37: #{_lambda_.1} parent=11 // pred_check
          %p268 = pneg %p189
        $region38: #{_lambda_.1} parent=11 // pred_check_branch
          %270 = sbr.rel (%p268) target = $region40
        $region39: #{_lambda_.1} parent=11 // pred_region
          _
        $region40: #{_lambda_.1} parent=11 // pred_fallthru
          _
      $region12: #{_lambda_.1} parent=5 // pred_fallthru
        _
      %p271 = scmp.lt.s32.totalorder %s16, 2
      // Predicated region
      $region41: #{_lambda_.1} parent=5 // pred_check
        %p272 = pneg %p271
      $region42: #{_lambda_.1} parent=5 // pred_check_branch
        %274 = sbr.rel (%p272) target = $region44
      $region43: #{_lambda_.1} parent=5 // pred_region
        // Predicated region
        $region45: #{_lambda_.1} parent=43 // pred_check
          %p275 = pneg %p36
        $region46: #{_lambda_.1} parent=43 // pred_check_branch
          %277 = sbr.rel (%p275) target = $region48
        $region47: #{_lambda_.1} parent=43 // pred_region
          %p278 = scmp.lt.s32.totalorder %s16, 1
          %s279 = scalar_select %p278, %s16, 1
          %s280 = smul.addr %s279, 2
          %s281 = smul.addr %s280, 4
          %s282 = scalar_lea.vmem %s0, %s281
        $region48: #{_lambda_.1} parent=43 // pred_fallthru
          _
      $region44: #{_lambda_.1} parent=5 // pred_fallthru
        _
      %p283 = scmp.le.s32.totalorder 1, %s16
      %p284 = scmp.lt.s32.totalorder %s16, 3
      %p285 = pnand %p283, %p284
      %p286 = pneg %p285
      // Predicated region
      $region49: #{_lambda_.1} parent=5 // pred_check
        _
      $region50: #{_lambda_.1} parent=5 // pred_check_branch
        %288 = sbr.rel (%p285) target = $region52
      $region51: #{_lambda_.1} parent=5 // pred_region
        %s289 = ssub.s32 %s16, 1
        // Predicated region
        $region53: #{_lambda_.1} parent=51 // pred_check
          %p290 = pneg %p126
        $region54: #{_lambda_.1} parent=51 // pred_check_branch
          %292 = sbr.rel (%p290) target = $region56
        $region55: #{_lambda_.1} parent=51 // pred_region
          %293 = dma.done [#allocation3], 12288
        $region56: #{_lambda_.1} parent=51 // pred_fallthru
          _
        // Predicated region
        $region57: #{_lambda_.1} parent=51 // pred_check
          %p294 = pneg %p168
        $region58: #{_lambda_.1} parent=51 // pred_check_branch
          %296 = sbr.rel (%p294) target = $region60
        $region59: #{_lambda_.1} parent=51 // pred_region
          %297 = dma.done [#allocation5], 6144
        $region60: #{_lambda_.1} parent=51 // pred_fallthru
          _
        %p298 = scmp.lt.s32.totalorder %s21, 1
        %s299 = scalar_select %p298, %s21, 1
        %s300 = smul.addr %s299, 2
        %s301 = smul.addr %s300, 4
        %s302 = scalar_lea.vmem %s0, %s301
        %p303 = pneg %p42
        %p304 = pneg %p39
        %p305 = pneg %p63
        %p306 = pneg %p60
        %p307 = pneg %p84
        %p308 = pneg %p81
        %p309 = pneg %p105
        %p310 = pneg %p102
        %p311 = pneg %p126
        %p312 = pneg %p123
        %p313 = pneg %p147
        %p314 = pneg %p144
        %p315 = pneg %p168
        %p316 = pneg %p165
        %p317 = pneg %p189
        %p318 = pneg %p186
        %p319 = pneg %p215
        %p320 = pneg %p212
        %p321 = scmp.lt.s32.totalorder %s21, 1
        %s322 = scalar_select %p321, %s21, 1
        %s323 = smul.addr %s322, 2
        %s324 = smul.addr %s323, 8
        %s325 = scalar_lea.vmem %s8, %s324
        %p326 = scmp.lt.s32.totalorder %s21, 1
        %s327 = scalar_select %p326, %s21, 1
        %s328 = smul.addr %s327, 2
        %s329 = smul.addr %s328, 4
        %s330 = scalar_lea.vmem %s0, %s329
        %p331 = scmp.lt.s32.totalorder %s21, 1
        %s332 = scalar_select %p331, %s21, 1
        %s333 = smul.addr %s332, 2
        %s334 = smul.addr %s333, 8
        %s335 = scalar_lea.vmem %s8, %s334
        %v337 = vld [vmem:[%s330] sm:$0xf]
        %v338 = vld [vmem:[%s330 + $0x4] sm:$0xf]
        %v339 = vld [vmem:[%s1] sm:$0xff]
        %v340 = vld [vmem:[%s1 + $0x8] sm:$0xff]
        %v341 = vld [vmem:[%s1 + $0x10] sm:$0xff]
        %v342 = vld [vmem:[%s1 + $0x18] sm:$0xff]
        %v343 = vld [vmem:[%s1 + $0x20] sm:$0xff]
        %v344 = vld [vmem:[%s1 + $0x28] sm:$0xff]
        %v345 = vld [vmem:[%s1 + $0x30] sm:$0xff]
        %v346 = vld [vmem:[%s1 + $0x38] sm:$0xff]
        %v347 = vld [vmem:[%s1 + $0x40] sm:$0xff]
        %v348 = vld [vmem:[%s1 + $0x48] sm:$0xff]
        %v349 = vld [vmem:[%s1 + $0x50] sm:$0xff]
        %v350 = vld [vmem:[%s1 + $0x58] sm:$0xff]
        %v351 = vld [vmem:[%s2] sm:$0x3f]
        %v353 = vlaneseq
        %v354 = vshrl.u32 %v353, 7
        %v355 = vsub.s32 0, %v354
        %v356 = vrot.slane %v351, %v355
        %v357 = vlaneseq
        %v358 = vshrl.u32 %v357, 7
        %v359 = vsub.s32 1, %v358
        %v360 = vrot.slane %v351, %v359
        %v361 = vlaneseq
        %v362 = vshrl.u32 %v361, 7
        %v363 = vsub.s32 2, %v362
        %v364 = vrot.slane %v351, %v363
        %v365 = vlaneseq
        %v366 = vshrl.u32 %v365, 7
        %v367 = vsub.s32 3, %v366
        %v368 = vrot.slane %v351, %v367
        %v369 = vlaneseq
        %v370 = vshrl.u32 %v369, 7
        %v371 = vsub.s32 4, %v370
        %v372 = vrot.slane %v351, %v371
        %v373 = vlaneseq
        %v374 = vshrl.u32 %v373, 7
        %v375 = vsub.s32 5, %v374
        %v376 = vrot.slane %v351, %v375
        %v385 = vunpack.c.l.b16 %v337
        %v386 = vunpack.c.l.b16 %v338
        %v387 = vpack.c.b16 %v386, %v385
        %v400 = vunpack.c.l.b16 %v339
        %v401 = vunpack.c.h.b16 %v339
        %v402 = vunpack.c.l.b16 %v340
        %v403 = vunpack.c.h.b16 %v340
        %v404 = vunpack.c.l.b16 %v341
        %v405 = vunpack.c.h.b16 %v341
        %v406 = vunpack.c.l.b16 %v342
        %v407 = vunpack.c.h.b16 %v342
        %v408 = vunpack.c.l.b16 %v343
        %v409 = vunpack.c.h.b16 %v343
        %v410 = vunpack.c.l.b16 %v344
        %v411 = vunpack.c.h.b16 %v344
        %v412 = vunpack.c.l.b16 %v345
        %v413 = vunpack.c.h.b16 %v345
        %v414 = vunpack.c.l.b16 %v346
        %v415 = vunpack.c.h.b16 %v346
        %v416 = vunpack.c.l.b16 %v347
        %v417 = vunpack.c.h.b16 %v347
        %v418 = vunpack.c.l.b16 %v348
        %v419 = vunpack.c.h.b16 %v348
        %v420 = vunpack.c.l.b16 %v349
        %v421 = vunpack.c.h.b16 %v349
        %v422 = vunpack.c.l.b16 %v350
        %v423 = vunpack.c.h.b16 %v350
        %v424 = vpack.c.b16 %v406, %v400
        %v425 = vpack.c.b16 %v407, %v401
        %v426 = vpack.c.b16 %v408, %v402
        %v427 = vpack.c.b16 %v409, %v403
        %v428 = vpack.c.b16 %v410, %v404
        %v429 = vpack.c.b16 %v411, %v405
        %v430 = vpack.c.b16 %v418, %v412
        %v431 = vpack.c.b16 %v419, %v413
        %v432 = vpack.c.b16 %v420, %v414
        %v433 = vpack.c.b16 %v421, %v415
        %v434 = vpack.c.b16 %v422, %v416
        %v435 = vpack.c.b16 %v423, %v417
        %vm448 = vcmask 261120
        %v450 = vsel %vm448, %v387, 0
        %452 = vmatprep.subr.bf16.mxu0 0
        %453 = vmatpush1.bf16.msra.mxu0 0
        %454 = vmatprep.subr.bf16.mxu0 0
        %455 = vmatpush1.bf16.msra.mxu0 0
        %456 = vmatprep.subr.bf16.mxu0 0
        %457 = vmatpush1.bf16.msra.mxu0 0
        %458 = vmatprep.subr.bf16.mxu0 0
        %459 = vmatpush1.bf16.msra.mxu0 0
        %460 = vmatprep.subr.bf16.mxu0 0
        %461 = vmatpush1.bf16.msra.mxu0 0
        %462 = vmatprep.subr.bf16.mxu0 0
        %463 = vmatpush1.bf16.msra.mxu0 0
        %464 = vmatprep.subr.bf16.mxu0 %v431
        %465 = vmatpush1.bf16.msra.mxu0 %v430
        %466 = vmatprep.subr.bf16.mxu0 %v425
        %467 = vmatpush1.bf16.msra.mxu0 %v424
        %468 = vmatprep.subr.bf16.mxu0 0
        %469 = vmatpush2.bf16.msra.mxu0 0
        %470 = vmatprep.subr.bf16.mxu0 0
        %471 = vmatpush2.bf16.msra.mxu0 0
        %472 = vmatprep.subr.bf16.mxu0 0
        %473 = vmatpush2.bf16.msra.mxu0 0
        %474 = vmatprep.subr.bf16.mxu0 0
        %475 = vmatpush2.bf16.msra.mxu0 0
        %476 = vmatprep.subr.bf16.mxu0 0
        %477 = vmatpush2.bf16.msra.mxu0 0
        %478 = vmatprep.subr.bf16.mxu0 0
        %479 = vmatpush2.bf16.msra.mxu0 0
        %480 = vmatprep.subr.bf16.mxu0 0
        %481 = vmatpush2.bf16.msra.mxu0 0
        %482 = vmatprep.subr.bf16.mxu0 0
        %483 = vmatpush2.bf16.msra.mxu0 0
        %484 = vmatprep.mubr.bf16.mxu0 0
        %485 = vmatmul.mubr.bf16.gmra.mxu0 %v450
        %v486 = vpop.f32.mrf.mxu0
        %v487 = vadd.f32 %v356, %v486
        %v488 = vpop.f32.mrf.mxu0
        %v489 = vadd.f32 %v360, %v488
        %v490 = vpop.f32.mrf.mxu0
        %v491 = vadd.f32 %v356, %v490
        %v492 = vpop.f32.mrf.mxu0
        %v493 = vadd.f32 %v360, %v492
        %494 = vdwg.mxu0
        %495 = vmatprep.subr.bf16.mxu0 0
        %496 = vmatpush1.bf16.msra.mxu0 0
        %497 = vmatprep.subr.bf16.mxu0 0
        %498 = vmatpush1.bf16.msra.mxu0 0
        %499 = vmatprep.subr.bf16.mxu0 0
        %500 = vmatpush1.bf16.msra.mxu0 0
        %501 = vmatprep.subr.bf16.mxu0 0
        %502 = vmatpush1.bf16.msra.mxu0 0
        %503 = vmatprep.subr.bf16.mxu0 0
        %504 = vmatpush1.bf16.msra.mxu0 0
        %505 = vmatprep.subr.bf16.mxu0 0
        %506 = vmatpush1.bf16.msra.mxu0 0
        %507 = vmatprep.subr.bf16.mxu0 %v433
        %508 = vmatpush1.bf16.msra.mxu0 %v432
        %509 = vmatprep.subr.bf16.mxu0 %v427
        %510 = vmatpush1.bf16.msra.mxu0 %v426
        %511 = vmatprep.subr.bf16.mxu0 0
        %512 = vmatpush2.bf16.msra.mxu0 0
        %513 = vmatprep.subr.bf16.mxu0 0
        %514 = vmatpush2.bf16.msra.mxu0 0
        %515 = vmatprep.subr.bf16.mxu0 0
        %516 = vmatpush2.bf16.msra.mxu0 0
        %517 = vmatprep.subr.bf16.mxu0 0
        %518 = vmatpush2.bf16.msra.mxu0 0
        %519 = vmatprep.subr.bf16.mxu0 0
        %520 = vmatpush2.bf16.msra.mxu0 0
        %521 = vmatprep.subr.bf16.mxu0 0
        %522 = vmatpush2.bf16.msra.mxu0 0
        %523 = vmatprep.subr.bf16.mxu0 0
        %524 = vmatpush2.bf16.msra.mxu0 0
        %525 = vmatprep.subr.bf16.mxu0 0
        %526 = vmatpush2.bf16.msra.mxu0 0
        %527 = vmatprep.mubr.bf16.mxu0 0
        %528 = vmatmul.mubr.bf16.gmra.mxu0 %v450
        %v529 = vpop.f32.mrf.mxu0
        %v530 = vadd.f32 %v364, %v529
        %v531 = vpop.f32.mrf.mxu0
        %v532 = vadd.f32 %v368, %v531
        %v533 = vpop.f32.mrf.mxu0
        %v534 = vadd.f32 %v364, %v533
        %v535 = vpop.f32.mrf.mxu0
        %v536 = vadd.f32 %v368, %v535
        %537 = vdwg.mxu0
        %538 = vmatprep.subr.bf16.mxu0 0
        %539 = vmatpush1.bf16.msra.mxu0 0
        %540 = vmatprep.subr.bf16.mxu0 0
        %541 = vmatpush1.bf16.msra.mxu0 0
        %542 = vmatprep.subr.bf16.mxu0 0
        %543 = vmatpush1.bf16.msra.mxu0 0
        %544 = vmatprep.subr.bf16.mxu0 0
        %545 = vmatpush1.bf16.msra.mxu0 0
        %546 = vmatprep.subr.bf16.mxu0 0
        %547 = vmatpush1.bf16.msra.mxu0 0
        %548 = vmatprep.subr.bf16.mxu0 0
        %549 = vmatpush1.bf16.msra.mxu0 0
        %550 = vmatprep.subr.bf16.mxu0 %v435
        %551 = vmatpush1.bf16.msra.mxu0 %v434
        %552 = vmatprep.subr.bf16.mxu0 %v429
        %553 = vmatpush1.bf16.msra.mxu0 %v428
        %554 = vmatprep.subr.bf16.mxu0 0
        %555 = vmatpush2.bf16.msra.mxu0 0
        %556 = vmatprep.subr.bf16.mxu0 0
        %557 = vmatpush2.bf16.msra.mxu0 0
        %558 = vmatprep.subr.bf16.mxu0 0
        %559 = vmatpush2.bf16.msra.mxu0 0
        %560 = vmatprep.subr.bf16.mxu0 0
        %561 = vmatpush2.bf16.msra.mxu0 0
        %562 = vmatprep.subr.bf16.mxu0 0
        %563 = vmatpush2.bf16.msra.mxu0 0
        %564 = vmatprep.subr.bf16.mxu0 0
        %565 = vmatpush2.bf16.msra.mxu0 0
        %566 = vmatprep.subr.bf16.mxu0 0
        %567 = vmatpush2.bf16.msra.mxu0 0
        %568 = vmatprep.subr.bf16.mxu0 0
        %569 = vmatpush2.bf16.msra.mxu0 0
        %570 = vmatprep.mubr.bf16.mxu0 0
        %571 = vmatmul.mubr.bf16.gmra.mxu0 %v450
        %v572 = vpop.f32.mrf.mxu0
        %v573 = vadd.f32 %v372, %v572
        %v574 = vpop.f32.mrf.mxu0
        %v575 = vadd.f32 %v376, %v574
        %v576 = vpop.f32.mrf.mxu0
        %v577 = vadd.f32 %v372, %v576
        %v578 = vpop.f32.mrf.mxu0
        %v579 = vadd.f32 %v376, %v578
        %580 = vdwg.mxu0
        %v581 = vxor.u32 %v530, 2147483648
        %v582 = vxor.u32 %v532, 2147483648
        %v583 = vxor.u32 %v534, 2147483648
        %v584 = vxor.u32 %v536, 2147483648
        %v585 = vmul.f32 %v581, 1.442695
        %v586 = vpow.pop %v585
        %v587 = vmul.f32 %v582, 1.442695
        %v588 = vpow.pop %v587
        %v589 = vmul.f32 %v583, 1.442695
        %v590 = vpow.pop %v589
        %v591 = vmul.f32 %v584, 1.442695
        %v592 = vpow.pop %v591
        %v593 = vadd.f32 %v586, 1.0
        %v594 = vadd.f32 %v588, 1.0
        %v595 = vadd.f32 %v590, 1.0
        %v596 = vadd.f32 %v592, 1.0
        %v597 = vrcp.pop %v593
        %v598 = vmul.f32 1.0, %v597
        %v599 = vrcp.pop %v594
        %v600 = vmul.f32 1.0, %v599
        %v601 = vrcp.pop %v595
        %v602 = vmul.f32 1.0, %v601
        %v603 = vrcp.pop %v596
        %v604 = vmul.f32 1.0, %v603
        %v605 = vmul.f32 %v487, %v598
        %v606 = vmul.f32 %v489, %v600
        %v607 = vmul.f32 %v491, %v602
        %v608 = vmul.f32 %v493, %v604
        %v609 = vadd.f32 %v605, %v573
        %v610 = vadd.f32 %v606, %v575
        %v611 = vadd.f32 %v607, %v577
        %v612 = vadd.f32 %v608, %v579
        %v613 = vmax.f32 %v609, 0.0
        %v614 = vmax.f32 %v610, 0.0
        %v615 = vmax.f32 %v611, 0.0
        %v616 = vmax.f32 %v612, 0.0
        %v617 = vpack.c.bf16 %v615, %v613
        %v618 = vpack.c.bf16 %v616, %v614
        %v619 = vld [vmem:[%s3] sm:$0xf]
        %v620 = vld [vmem:[%s3 + $0x4] sm:$0xf]
        %v621 = vld [vmem:[%s3 + $0x8] sm:$0xf]
        %v622 = vld [vmem:[%s3 + $0xc] sm:$0xf]
        %v623 = vld [vmem:[%s3 + $0x10] sm:$0xf]
        %v624 = vld [vmem:[%s3 + $0x14] sm:$0xf]
        %v631 = vunpack.c.l.b16 %v619
        %v632 = vunpack.c.l.b16 %v620
        %v633 = vunpack.c.l.b16 %v621
        %v634 = vunpack.c.l.b16 %v622
        %v635 = vunpack.c.l.b16 %v623
        %v636 = vunpack.c.l.b16 %v624
        %v637 = vpack.c.b16 %v632, %v631
        %v638 = vpack.c.b16 %v634, %v633
        %v639 = vpack.c.b16 %v636, %v635
        %vm640 = vcmask 130048
        %v642 = vsel %vm640, %v637, 0
        %v645 = vsel %vm640, %v638, 0
        %v648 = vsel %vm640, %v639, 0
        %650 = vmatprep.subr.bf16.mxu0 0
        %651 = vmatpush1.bf16.msra.mxu0 0
        %652 = vmatprep.subr.bf16.mxu0 0
        %653 = vmatpush1.bf16.msra.mxu0 0
        %654 = vmatprep.subr.bf16.mxu0 0
        %655 = vmatpush1.bf16.msra.mxu0 0
        %656 = vmatprep.subr.bf16.mxu0 0
        %657 = vmatpush1.bf16.msra.mxu0 0
        %658 = vmatprep.subr.bf16.mxu0 0
        %659 = vmatpush1.bf16.msra.mxu0 0
        %660 = vmatprep.subr.bf16.mxu0 0
        %661 = vmatpush1.bf16.msra.mxu0 0
        %662 = vmatprep.subr.bf16.mxu0 0
        %663 = vmatpush1.bf16.msra.mxu0 0
        %664 = vmatprep.subr.bf16.mxu0 %v618
        %665 = vmatpush1.bf16.msra.mxu0 %v617
        %666 = vmatprep.subr.bf16.mxu0 0
        %667 = vmatpush2.bf16.msra.mxu0 0
        %668 = vmatprep.subr.bf16.mxu0 0
        %669 = vmatpush2.bf16.msra.mxu0 0
        %670 = vmatprep.subr.bf16.mxu0 0
        %671 = vmatpush2.bf16.msra.mxu0 0
        %672 = vmatprep.subr.bf16.mxu0 0
        %673 = vmatpush2.bf16.msra.mxu0 0
        %674 = vmatprep.subr.bf16.mxu0 0
        %675 = vmatpush2.bf16.msra.mxu0 0
        %676 = vmatprep.subr.bf16.mxu0 0
        %677 = vmatpush2.bf16.msra.mxu0 0
        %678 = vmatprep.subr.bf16.mxu0 0
        %679 = vmatpush2.bf16.msra.mxu0 0
        %680 = vmatprep.subr.bf16.mxu0 0
        %681 = vmatpush2.bf16.msra.mxu0 0
        %682 = vmatprep.mubr.bf16.mxu0 0
        %683 = vmatmul.mubr.bf16.gmra.mxu0 %v642
        %v684 = vpop.f32.mrf.mxu0
        %v685 = vadd.f32 0.0, %v684
        %v686 = vpop.f32.mrf.mxu0
        %v687 = vadd.f32 0.0, %v686
        %v688 = vpop.f32.mrf.mxu0
        %v689 = vadd.f32 0.0, %v688
        %v690 = vpop.f32.mrf.mxu0
        %v691 = vadd.f32 0.0, %v690
        %692 = vmatprep.mubr.bf16.mxu0 0
        %693 = vmatmul.mubr.bf16.gmra.mxu0 %v645
        %v694 = vpop.f32.mrf.mxu0
        %v695 = vadd.f32 0.0, %v694
        %v696 = vpop.f32.mrf.mxu0
        %v697 = vadd.f32 0.0, %v696
        %v698 = vpop.f32.mrf.mxu0
        %v699 = vadd.f32 0.0, %v698
        %v700 = vpop.f32.mrf.mxu0
        %v701 = vadd.f32 0.0, %v700
        %702 = vmatprep.mubr.bf16.mxu0 0
        %703 = vmatmul.mubr.bf16.gmra.mxu0 %v648
        %v704 = vpop.f32.mrf.mxu0
        %v705 = vadd.f32 0.0, %v704
        %v706 = vpop.f32.mrf.mxu0
        %v707 = vadd.f32 0.0, %v706
        %v708 = vpop.f32.mrf.mxu0
        %v709 = vadd.f32 0.0, %v708
        %v710 = vpop.f32.mrf.mxu0
        %v711 = vadd.f32 0.0, %v710
        %712 = vdwg.mxu0
        %v713 = vpack.c.bf16 %v689, %v685
        %v714 = vpack.c.bf16 %v691, %v687
        %v715 = vpack.c.bf16 %v699, %v695
        %v716 = vpack.c.bf16 %v701, %v697
        %v717 = vpack.c.bf16 %v709, %v705
        %v718 = vpack.c.bf16 %v711, %v707
        %v719 = vld [vmem:[#allocation2] sm:$0xff]
        %v720 = vld [vmem:[#allocation2 + $0x8] sm:$0xff]
        %v721 = vld [vmem:[#allocation2 + $0x10] sm:$0xff]
        %v722 = vld [vmem:[#allocation2 + $0x18] sm:$0xff]
        %v723 = vld [vmem:[#allocation2 + $0x20] sm:$0xff]
        %v724 = vld [vmem:[#allocation2 + $0x28] sm:$0xff]
        %v725 = vld [vmem:[#allocation2 + $0x30] sm:$0xff]
        %v726 = vld [vmem:[#allocation2 + $0x38] sm:$0xff]
        %v727 = vld [vmem:[#allocation2 + $0x40] sm:$0xff]
        %v728 = vld [vmem:[#allocation2 + $0x48] sm:$0xff]
        %v729 = vld [vmem:[#allocation2 + $0x50] sm:$0xff]
        %v730 = vld [vmem:[#allocation2 + $0x58] sm:$0xff]
        %v731 = vld [vmem:[#allocation2 + $0x60] sm:$0xff]
        %v732 = vld [vmem:[#allocation2 + $0x68] sm:$0xff]
        %v733 = vld [vmem:[#allocation2 + $0x70] sm:$0xff]
        %v734 = vld [vmem:[#allocation2 + $0x78] sm:$0xff]
        %v735 = vld [vmem:[#allocation2 + $0x80] sm:$0xff]
        %v736 = vld [vmem:[#allocation2 + $0x88] sm:$0xff]
        %v737 = vld [vmem:[#allocation2 + $0x90] sm:$0xff]
        %v738 = vld [vmem:[#allocation2 + $0x98] sm:$0xff]
        %v739 = vld [vmem:[#allocation2 + $0xa0] sm:$0xff]
        %v740 = vld [vmem:[#allocation2 + $0xa8] sm:$0xff]
        %v741 = vld [vmem:[#allocation2 + $0xb0] sm:$0xff]
        %v742 = vld [vmem:[#allocation2 + $0xb8] sm:$0xff]
        %v743 = vld [vmem:[#allocation2 + $0xc0] sm:$0xff]
        %v744 = vld [vmem:[#allocation2 + $0xc8] sm:$0xff]
        %v745 = vld [vmem:[#allocation2 + $0xd0] sm:$0xff]
        %v746 = vld [vmem:[#allocation2 + $0xd8] sm:$0xff]
        %v747 = vld [vmem:[#allocation2 + $0xe0] sm:$0xff]
        %v748 = vld [vmem:[#allocation2 + $0xe8] sm:$0xff]
        %v749 = vld [vmem:[#allocation2 + $0xf0] sm:$0xff]
        %v750 = vld [vmem:[#allocation2 + $0xf8] sm:$0xff]
        %v751 = vld [vmem:[#allocation2 + $0x100] sm:$0xff]
        %v752 = vld [vmem:[#allocation2 + $0x108] sm:$0xff]
        %v753 = vld [vmem:[#allocation2 + $0x110] sm:$0xff]
        %v754 = vld [vmem:[#allocation2 + $0x118] sm:$0xff]
        %v755 = vld [vmem:[#allocation2 + $0x120] sm:$0xff]
        %v756 = vld [vmem:[#allocation2 + $0x128] sm:$0xff]
        %v757 = vld [vmem:[#allocation2 + $0x130] sm:$0xff]
        %v758 = vld [vmem:[#allocation2 + $0x138] sm:$0xff]
        %v759 = vld [vmem:[#allocation2 + $0x140] sm:$0xff]
        %v760 = vld [vmem:[#allocation2 + $0x148] sm:$0xff]
        %v761 = vld [vmem:[#allocation2 + $0x150] sm:$0xff]
        %v762 = vld [vmem:[#allocation2 + $0x158] sm:$0xff]
        %v763 = vld [vmem:[#allocation2 + $0x160] sm:$0xff]
        %v764 = vld [vmem:[#allocation2 + $0x168] sm:$0xff]
        %v765 = vld [vmem:[#allocation2 + $0x170] sm:$0xff]
        %v766 = vld [vmem:[#allocation2 + $0x178] sm:$0xff]
        %v767 = vld [vmem:[#allocation2 + $0x180] sm:$0xff]
        %v768 = vld [vmem:[#allocation2 + $0x188] sm:$0xff]
        %v769 = vld [vmem:[#allocation2 + $0x190] sm:$0xff]
        %v770 = vld [vmem:[#allocation2 + $0x198] sm:$0xff]
        %v771 = vld [vmem:[#allocation2 + $0x1a0] sm:$0xff]
        %v772 = vld [vmem:[#allocation2 + $0x1a8] sm:$0xff]
        %v773 = vld [vmem:[#allocation2 + $0x1b0] sm:$0xff]
        %v774 = vld [vmem:[#allocation2 + $0x1b8] sm:$0xff]
        %v775 = vld [vmem:[#allocation2 + $0x1c0] sm:$0xff]
        %v776 = vld [vmem:[#allocation2 + $0x1c8] sm:$0xff]
        %v777 = vld [vmem:[#allocation2 + $0x1d0] sm:$0xff]
        %v778 = vld [vmem:[#allocation2 + $0x1d8] sm:$0xff]
        %v779 = vld [vmem:[#allocation2 + $0x1e0] sm:$0xff]
        %v780 = vld [vmem:[#allocation2 + $0x1e8] sm:$0xff]
        %v781 = vld [vmem:[#allocation2 + $0x1f0] sm:$0xff]
        %v782 = vld [vmem:[#allocation2 + $0x1f8] sm:$0xff]
        %v783 = vld [vmem:[#allocation2 + $0x200] sm:$0xff]
        %v784 = vld [vmem:[#allocation2 + $0x208] sm:$0xff]
        %v785 = vld [vmem:[#allocation2 + $0x210] sm:$0xff]
        %v786 = vld [vmem:[#allocation2 + $0x218] sm:$0xff]
        %v787 = vld [vmem:[#allocation2 + $0x220] sm:$0xff]
        %v788 = vld [vmem:[#allocation2 + $0x228] sm:$0xff]
        %v789 = vld [vmem:[#allocation2 + $0x230] sm:$0xff]
        %v790 = vld [vmem:[#allocation2 + $0x238] sm:$0xff]
        %v791 = vld [vmem:[#allocation2 + $0x240] sm:$0xff]
        %v792 = vld [vmem:[#allocation2 + $0x248] sm:$0xff]
        %v793 = vld [vmem:[#allocation2 + $0x250] sm:$0xff]
        %v794 = vld [vmem:[#allocation2 + $0x258] sm:$0xff]
        %v795 = vld [vmem:[#allocation2 + $0x260] sm:$0xff]
        %v796 = vld [vmem:[#allocation2 + $0x268] sm:$0xff]
        %v797 = vld [vmem:[#allocation2 + $0x270] sm:$0xff]
        %v798 = vld [vmem:[#allocation2 + $0x278] sm:$0xff]
        %v799 = vld [vmem:[#allocation2 + $0x280] sm:$0xff]
        %v800 = vld [vmem:[#allocation2 + $0x288] sm:$0xff]
        %v801 = vld [vmem:[#allocation2 + $0x290] sm:$0xff]
        %v802 = vld [vmem:[#allocation2 + $0x298] sm:$0xff]
        %v803 = vld [vmem:[#allocation2 + $0x2a0] sm:$0xff]
        %v804 = vld [vmem:[#allocation2 + $0x2a8] sm:$0xff]
        %v805 = vld [vmem:[#allocation2 + $0x2b0] sm:$0xff]
        %v806 = vld [vmem:[#allocation2 + $0x2b8] sm:$0xff]
        %v807 = vld [vmem:[#allocation2 + $0x2c0] sm:$0xff]
        %v808 = vld [vmem:[#allocation2 + $0x2c8] sm:$0xff]
        %v809 = vld [vmem:[#allocation2 + $0x2d0] sm:$0xff]
        %v810 = vld [vmem:[#allocation2 + $0x2d8] sm:$0xff]
        %v811 = vld [vmem:[#allocation2 + $0x2e0] sm:$0xff]
        %v812 = vld [vmem:[#allocation2 + $0x2e8] sm:$0xff]
        %v813 = vld [vmem:[#allocation2 + $0x2f0] sm:$0xff]
        %v814 = vld [vmem:[#allocation2 + $0x2f8] sm:$0xff]
        %v815 = vld [vmem:[%s5] sm:$0x3]
        %v817 = vlaneseq
        %v818 = vshrl.u32 %v817, 7
        %v819 = vsub.s32 0, %v818
        %v820 = vrot.slane %v815, %v819
        %v821 = vlaneseq
        %v822 = vshrl.u32 %v821, 7
        %v823 = vsub.s32 1, %v822
        %v824 = vrot.slane %v815, %v823
        %v923 = vunpack.c.l.b16 %v719
        %v924 = vunpack.c.h.b16 %v719
        %v925 = vunpack.c.l.b16 %v720
        %v926 = vunpack.c.h.b16 %v720
        %v927 = vunpack.c.l.b16 %v721
        %v928 = vunpack.c.h.b16 %v721
        %v929 = vunpack.c.l.b16 %v722
        %v930 = vunpack.c.h.b16 %v722
        %v931 = vunpack.c.l.b16 %v723
        %v932 = vunpack.c.h.b16 %v723
        %v933 = vunpack.c.l.b16 %v724
        %v934 = vunpack.c.h.b16 %v724
        %v935 = vunpack.c.l.b16 %v725
        %v936 = vunpack.c.h.b16 %v725
        %v937 = vunpack.c.l.b16 %v726
        %v938 = vunpack.c.h.b16 %v726
        %v939 = vunpack.c.l.b16 %v727
        %v940 = vunpack.c.h.b16 %v727
        %v941 = vunpack.c.l.b16 %v728
        %v942 = vunpack.c.h.b16 %v728
        %v943 = vunpack.c.l.b16 %v729
        %v944 = vunpack.c.h.b16 %v729
        %v945 = vunpack.c.l.b16 %v730
        %v946 = vunpack.c.h.b16 %v730
        %v947 = vunpack.c.l.b16 %v731
        %v948 = vunpack.c.h.b16 %v731
        %v949 = vunpack.c.l.b16 %v732
        %v950 = vunpack.c.h.b16 %v732
        %v951 = vunpack.c.l.b16 %v733
        %v952 = vunpack.c.h.b16 %v733
        %v953 = vunpack.c.l.b16 %v734
        %v954 = vunpack.c.h.b16 %v734
        %v955 = vunpack.c.l.b16 %v735
        %v956 = vunpack.c.h.b16 %v735
        %v957 = vunpack.c.l.b16 %v736
        %v958 = vunpack.c.h.b16 %v736
        %v959 = vunpack.c.l.b16 %v737
        %v960 = vunpack.c.h.b16 %v737
        %v961 = vunpack.c.l.b16 %v738
        %v962 = vunpack.c.h.b16 %v738
        %v963 = vunpack.c.l.b16 %v739
        %v964 = vunpack.c.h.b16 %v739
        %v965 = vunpack.c.l.b16 %v740
        %v966 = vunpack.c.h.b16 %v740
        %v967 = vunpack.c.l.b16 %v741
        %v968 = vunpack.c.h.b16 %v741
        %v969 = vunpack.c.l.b16 %v742
        %v970 = vunpack.c.h.b16 %v742
        %v971 = vunpack.c.l.b16 %v743
        %v972 = vunpack.c.h.b16 %v743
        %v973 = vunpack.c.l.b16 %v744
        %v974 = vunpack.c.h.b16 %v744
        %v975 = vunpack.c.l.b16 %v745
        %v976 = vunpack.c.h.b16 %v745
        %v977 = vunpack.c.l.b16 %v746
        %v978 = vunpack.c.h.b16 %v746
        %v979 = vunpack.c.l.b16 %v747
        %v980 = vunpack.c.h.b16 %v747
        %v981 = vunpack.c.l.b16 %v748
        %v982 = vunpack.c.h.b16 %v748
        %v983 = vunpack.c.l.b16 %v749
        %v984 = vunpack.c.h.b16 %v749
        %v985 = vunpack.c.l.b16 %v750
        %v986 = vunpack.c.h.b16 %v750
        %v987 = vunpack.c.l.b16 %v751
        %v988 = vunpack.c.h.b16 %v751
        %v989 = vunpack.c.l.b16 %v752
        %v990 = vunpack.c.h.b16 %v752
        %v991 = vunpack.c.l.b16 %v753
        %v992 = vunpack.c.h.b16 %v753
        %v993 = vunpack.c.l.b16 %v754
        %v994 = vunpack.c.h.b16 %v754
        %v995 = vunpack.c.l.b16 %v755
        %v996 = vunpack.c.h.b16 %v755
        %v997 = vunpack.c.l.b16 %v756
        %v998 = vunpack.c.h.b16 %v756
        %v999 = vunpack.c.l.b16 %v757
        %v1000 = vunpack.c.h.b16 %v757
        %v1001 = vunpack.c.l.b16 %v758
        %v1002 = vunpack.c.h.b16 %v758
        %v1003 = vunpack.c.l.b16 %v759
        %v1004 = vunpack.c.h.b16 %v759
        %v1005 = vunpack.c.l.b16 %v760
        %v1006 = vunpack.c.h.b16 %v760
        %v1007 = vunpack.c.l.b16 %v761
        %v1008 = vunpack.c.h.b16 %v761
        %v1009 = vunpack.c.l.b16 %v762
        %v1010 = vunpack.c.h.b16 %v762
        %v1011 = vunpack.c.l.b16 %v763
        %v1012 = vunpack.c.h.b16 %v763
        %v1013 = vunpack.c.l.b16 %v764
        %v1014 = vunpack.c.h.b16 %v764
        %v1015 = vunpack.c.l.b16 %v765
        %v1016 = vunpack.c.h.b16 %v765
        %v1017 = vunpack.c.l.b16 %v766
        %v1018 = vunpack.c.h.b16 %v766
        %v1019 = vunpack.c.l.b16 %v767
        %v1020 = vunpack.c.h.b16 %v767
        %v1021 = vunpack.c.l.b16 %v768
        %v1022 = vunpack.c.h.b16 %v768
        %v1023 = vunpack.c.l.b16 %v769
        %v1024 = vunpack.c.h.b16 %v769
        %v1025 = vunpack.c.l.b16 %v770
        %v1026 = vunpack.c.h.b16 %v770
        %v1027 = vunpack.c.l.b16 %v771
        %v1028 = vunpack.c.h.b16 %v771
        %v1029 = vunpack.c.l.b16 %v772
        %v1030 = vunpack.c.h.b16 %v772
        %v1031 = vunpack.c.l.b16 %v773
        %v1032 = vunpack.c.h.b16 %v773
        %v1033 = vunpack.c.l.b16 %v774
        %v1034 = vunpack.c.h.b16 %v774
        %v1035 = vunpack.c.l.b16 %v775
        %v1036 = vunpack.c.h.b16 %v775
        %v1037 = vunpack.c.l.b16 %v776
        %v1038 = vunpack.c.h.b16 %v776
        %v1039 = vunpack.c.l.b16 %v777
        %v1040 = vunpack.c.h.b16 %v777
        %v1041 = vunpack.c.l.b16 %v778
        %v1042 = vunpack.c.h.b16 %v778
        %v1043 = vunpack.c.l.b16 %v779
        %v1044 = vunpack.c.h.b16 %v779
        %v1045 = vunpack.c.l.b16 %v780
        %v1046 = vunpack.c.h.b16 %v780
        %v1047 = vunpack.c.l.b16 %v781
        %v1048 = vunpack.c.h.b16 %v781
        %v1049 = vunpack.c.l.b16 %v782
        %v1050 = vunpack.c.h.b16 %v782
        %v1051 = vunpack.c.l.b16 %v783
        %v1052 = vunpack.c.h.b16 %v783
        %v1053 = vunpack.c.l.b16 %v784
        %v1054 = vunpack.c.h.b16 %v784
        %v1055 = vunpack.c.l.b16 %v785
        %v1056 = vunpack.c.h.b16 %v785
        %v1057 = vunpack.c.l.b16 %v786
        %v1058 = vunpack.c.h.b16 %v786
        %v1059 = vunpack.c.l.b16 %v787
        %v1060 = vunpack.c.h.b16 %v787
        %v1061 = vunpack.c.l.b16 %v788
        %v1062 = vunpack.c.h.b16 %v788
        %v1063 = vunpack.c.l.b16 %v789
        %v1064 = vunpack.c.h.b16 %v789
        %v1065 = vunpack.c.l.b16 %v790
        %v1066 = vunpack.c.h.b16 %v790
        %v1067 = vunpack.c.l.b16 %v791
        %v1068 = vunpack.c.h.b16 %v791
        %v1069 = vunpack.c.l.b16 %v792
        %v1070 = vunpack.c.h.b16 %v792
        %v1071 = vunpack.c.l.b16 %v793
        %v1072 = vunpack.c.h.b16 %v793
        %v1073 = vunpack.c.l.b16 %v794
        %v1074 = vunpack.c.h.b16 %v794
        %v1075 = vunpack.c.l.b16 %v795
        %v1076 = vunpack.c.h.b16 %v795
        %v1077 = vunpack.c.l.b16 %v796
        %v1078 = vunpack.c.h.b16 %v796
        %v1079 = vunpack.c.l.b16 %v797
        %v1080 = vunpack.c.h.b16 %v797
        %v1081 = vunpack.c.l.b16 %v798
        %v1082 = vunpack.c.h.b16 %v798
        %v1083 = vunpack.c.l.b16 %v799
        %v1084 = vunpack.c.h.b16 %v799
        %v1085 = vunpack.c.l.b16 %v800
        %v1086 = vunpack.c.h.b16 %v800
        %v1087 = vunpack.c.l.b16 %v801
        %v1088 = vunpack.c.h.b16 %v801
        %v1089 = vunpack.c.l.b16 %v802
        %v1090 = vunpack.c.h.b16 %v802
        %v1091 = vunpack.c.l.b16 %v803
        %v1092 = vunpack.c.h.b16 %v803
        %v1093 = vunpack.c.l.b16 %v804
        %v1094 = vunpack.c.h.b16 %v804
        %v1095 = vunpack.c.l.b16 %v805
        %v1096 = vunpack.c.h.b16 %v805
        %v1097 = vunpack.c.l.b16 %v806
        %v1098 = vunpack.c.h.b16 %v806
        %v1099 = vunpack.c.l.b16 %v807
        %v1100 = vunpack.c.h.b16 %v807
        %v1101 = vunpack.c.l.b16 %v808
        %v1102 = vunpack.c.h.b16 %v808
        %v1103 = vunpack.c.l.b16 %v809
        %v1104 = vunpack.c.h.b16 %v809
        %v1105 = vunpack.c.l.b16 %v810
        %v1106 = vunpack.c.h.b16 %v810
        %v1107 = vunpack.c.l.b16 %v811
        %v1108 = vunpack.c.h.b16 %v811
        %v1109 = vunpack.c.l.b16 %v812
        %v1110 = vunpack.c.h.b16 %v812
        %v1111 = vunpack.c.l.b16 %v813
        %v1112 = vunpack.c.h.b16 %v813
        %v1113 = vunpack.c.l.b16 %v814
        %v1114 = vunpack.c.h.b16 %v814
        %v1115 = vpack.c.b16 %v925, %v923
        %v1116 = vpack.c.b16 %v926, %v924
        %v1117 = vpack.c.b16 %v929, %v927
        %v1118 = vpack.c.b16 %v930, %v928
        %v1119 = vpack.c.b16 %v933, %v931
        %v1120 = vpack.c.b16 %v934, %v932
        %v1121 = vpack.c.b16 %v937, %v935
        %v1122 = vpack.c.b16 %v938, %v936
        %v1123 = vpack.c.b16 %v941, %v939
        %v1124 = vpack.c.b16 %v942, %v940
        %v1125 = vpack.c.b16 %v945, %v943
        %v1126 = vpack.c.b16 %v946, %v944
        %v1127 = vpack.c.b16 %v949, %v947
        %v1128 = vpack.c.b16 %v950, %v948
        %v1129 = vpack.c.b16 %v953, %v951
        %v1130 = vpack.c.b16 %v954, %v952
        %v1131 = vpack.c.b16 %v957, %v955
        %v1132 = vpack.c.b16 %v958, %v956
        %v1133 = vpack.c.b16 %v961, %v959
        %v1134 = vpack.c.b16 %v962, %v960
        %v1135 = vpack.c.b16 %v965, %v963
        %v1136 = vpack.c.b16 %v966, %v964
        %v1137 = vpack.c.b16 %v969, %v967
        %v1138 = vpack.c.b16 %v970, %v968
        %v1139 = vpack.c.b16 %v973, %v971
        %v1140 = vpack.c.b16 %v974, %v972
        %v1141 = vpack.c.b16 %v977, %v975
        %v1142 = vpack.c.b16 %v978, %v976
        %v1143 = vpack.c.b16 %v981, %v979
        %v1144 = vpack.c.b16 %v982, %v980
        %v1145 = vpack.c.b16 %v985, %v983
        %v1146 = vpack.c.b16 %v986, %v984
        %v1147 = vpack.c.b16 %v989, %v987
        %v1148 = vpack.c.b16 %v990, %v988
        %v1149 = vpack.c.b16 %v993, %v991
        %v1150 = vpack.c.b16 %v994, %v992
        %v1151 = vpack.c.b16 %v997, %v995
        %v1152 = vpack.c.b16 %v998, %v996
        %v1153 = vpack.c.b16 %v1001, %v999
        %v1154 = vpack.c.b16 %v1002, %v1000
        %v1155 = vpack.c.b16 %v1005, %v1003
        %v1156 = vpack.c.b16 %v1006, %v1004
        %v1157 = vpack.c.b16 %v1009, %v1007
        %v1158 = vpack.c.b16 %v1010, %v1008
        %v1159 = vpack.c.b16 %v1013, %v1011
        %v1160 = vpack.c.b16 %v1014, %v1012
        %v1161 = vpack.c.b16 %v1017, %v1015
        %v1162 = vpack.c.b16 %v1018, %v1016
        %v1163 = vpack.c.b16 %v1021, %v1019
        %v1164 = vpack.c.b16 %v1022, %v1020
        %v1165 = vpack.c.b16 %v1025, %v1023
        %v1166 = vpack.c.b16 %v1026, %v1024
        %v1167 = vpack.c.b16 %v1029, %v1027
        %v1168 = vpack.c.b16 %v1030, %v1028
        %v1169 = vpack.c.b16 %v1033, %v1031
        %v1170 = vpack.c.b16 %v1034, %v1032
        %v1171 = vpack.c.b16 %v1037, %v1035
        %v1172 = vpack.c.b16 %v1038, %v1036
        %v1173 = vpack.c.b16 %v1041, %v1039
        %v1174 = vpack.c.b16 %v1042, %v1040
        %v1175 = vpack.c.b16 %v1045, %v1043
        %v1176 = vpack.c.b16 %v1046, %v1044
        %v1177 = vpack.c.b16 %v1049, %v1047
        %v1178 = vpack.c.b16 %v1050, %v1048
        %v1179 = vpack.c.b16 %v1053, %v1051
        %v1180 = vpack.c.b16 %v1054, %v1052
        %v1181 = vpack.c.b16 %v1057, %v1055
        %v1182 = vpack.c.b16 %v1058, %v1056
        %v1183 = vpack.c.b16 %v1061, %v1059
        %v1184 = vpack.c.b16 %v1062, %v1060
        %v1185 = vpack.c.b16 %v1065, %v1063
        %v1186 = vpack.c.b16 %v1066, %v1064
        %v1187 = vpack.c.b16 %v1069, %v1067
        %v1188 = vpack.c.b16 %v1070, %v1068
        %v1189 = vpack.c.b16 %v1073, %v1071
        %v1190 = vpack.c.b16 %v1074, %v1072
        %v1191 = vpack.c.b16 %v1077, %v1075
        %v1192 = vpack.c.b16 %v1078, %v1076
        %v1193 = vpack.c.b16 %v1081, %v1079
        %v1194 = vpack.c.b16 %v1082, %v1080
        %v1195 = vpack.c.b16 %v1085, %v1083
        %v1196 = vpack.c.b16 %v1086, %v1084
        %v1197 = vpack.c.b16 %v1089, %v1087
        %v1198 = vpack.c.b16 %v1090, %v1088
        %v1199 = vpack.c.b16 %v1093, %v1091
        %v1200 = vpack.c.b16 %v1094, %v1092
        %v1201 = vpack.c.b16 %v1097, %v1095
        %v1202 = vpack.c.b16 %v1098, %v1096
        %v1203 = vpack.c.b16 %v1101, %v1099
        %v1204 = vpack.c.b16 %v1102, %v1100
        %v1205 = vpack.c.b16 %v1105, %v1103
        %v1206 = vpack.c.b16 %v1106, %v1104
        %v1207 = vpack.c.b16 %v1109, %v1107
        %v1208 = vpack.c.b16 %v1110, %v1108
        %v1209 = vpack.c.b16 %v1113, %v1111
        %v1210 = vpack.c.b16 %v1114, %v1112
        %1307 = vmatprep.subr.bf16.mxu0 %v1130
        %1308 = vmatpush1.bf16.msra.mxu0 %v1129
        %1309 = vmatprep.subr.bf16.mxu0 %v1128
        %1310 = vmatpush1.bf16.msra.mxu0 %v1127
        %1311 = vmatprep.subr.bf16.mxu0 %v1126
        %1312 = vmatpush1.bf16.msra.mxu0 %v1125
        %1313 = vmatprep.subr.bf16.mxu0 %v1124
        %1314 = vmatpush1.bf16.msra.mxu0 %v1123
        %1315 = vmatprep.subr.bf16.mxu0 %v1122
        %1316 = vmatpush1.bf16.msra.mxu0 %v1121
        %1317 = vmatprep.subr.bf16.mxu0 %v1120
        %1318 = vmatpush1.bf16.msra.mxu0 %v1119
        %1319 = vmatprep.subr.bf16.mxu0 %v1118
        %1320 = vmatpush1.bf16.msra.mxu0 %v1117
        %1321 = vmatprep.subr.bf16.mxu0 %v1116
        %1322 = vmatpush1.bf16.msra.mxu0 %v1115
        %1323 = vmatprep.subr.bf16.mxu0 %v1146
        %1324 = vmatpush2.bf16.msra.mxu0 %v1145
        %1325 = vmatprep.subr.bf16.mxu0 %v1144
        %1326 = vmatpush2.bf16.msra.mxu0 %v1143
        %1327 = vmatprep.subr.bf16.mxu0 %v1142
        %1328 = vmatpush2.bf16.msra.mxu0 %v1141
        %1329 = vmatprep.subr.bf16.mxu0 %v1140
        %1330 = vmatpush2.bf16.msra.mxu0 %v1139
        %1331 = vmatprep.subr.bf16.mxu0 %v1138
        %1332 = vmatpush2.bf16.msra.mxu0 %v1137
        %1333 = vmatprep.subr.bf16.mxu0 %v1136
        %1334 = vmatpush2.bf16.msra.mxu0 %v1135
        %1335 = vmatprep.subr.bf16.mxu0 %v1134
        %1336 = vmatpush2.bf16.msra.mxu0 %v1133
        %1337 = vmatprep.subr.bf16.mxu0 %v1132
        %1338 = vmatpush2.bf16.msra.mxu0 %v1131
        %1339 = vmatprep.mubr.bf16.mxu0 %v714
        %1340 = vmatmul.mubr.bf16.gmra.mxu0 %v713
        %v1341 = vpop.f32.mrf.mxu0
        %v1342 = vadd.f32 %v820, %v1341
        %v1343 = vpop.f32.mrf.mxu0
        %v1344 = vadd.f32 %v824, %v1343
        %v1345 = vpop.f32.mrf.mxu0
        %v1346 = vadd.f32 %v820, %v1345
        %v1347 = vpop.f32.mrf.mxu0
        %v1348 = vadd.f32 %v824, %v1347
        %1349 = vdwg.mxu0
        %1350 = vmatprep.subr.bf16.mxu0 %v1162
        %1351 = vmatpush1.bf16.msra.mxu0 %v1161
        %1352 = vmatprep.subr.bf16.mxu0 %v1160
        %1353 = vmatpush1.bf16.msra.mxu0 %v1159
        %1354 = vmatprep.subr.bf16.mxu0 %v1158
        %1355 = vmatpush1.bf16.msra.mxu0 %v1157
        %1356 = vmatprep.subr.bf16.mxu0 %v1156
        %1357 = vmatpush1.bf16.msra.mxu0 %v1155
        %1358 = vmatprep.subr.bf16.mxu0 %v1154
        %1359 = vmatpush1.bf16.msra.mxu0 %v1153
        %1360 = vmatprep.subr.bf16.mxu0 %v1152
        %1361 = vmatpush1.bf16.msra.mxu0 %v1151
        %1362 = vmatprep.subr.bf16.mxu0 %v1150
        %1363 = vmatpush1.bf16.msra.mxu0 %v1149
        %1364 = vmatprep.subr.bf16.mxu0 %v1148
        %1365 = vmatpush1.bf16.msra.mxu0 %v1147
        %1366 = vmatprep.subr.bf16.mxu0 %v1178
        %1367 = vmatpush2.bf16.msra.mxu0 %v1177
        %1368 = vmatprep.subr.bf16.mxu0 %v1176
        %1369 = vmatpush2.bf16.msra.mxu0 %v1175
        %1370 = vmatprep.subr.bf16.mxu0 %v1174
        %1371 = vmatpush2.bf16.msra.mxu0 %v1173
        %1372 = vmatprep.subr.bf16.mxu0 %v1172
        %1373 = vmatpush2.bf16.msra.mxu0 %v1171
        %1374 = vmatprep.subr.bf16.mxu0 %v1170
        %1375 = vmatpush2.bf16.msra.mxu0 %v1169
        %1376 = vmatprep.subr.bf16.mxu0 %v1168
        %1377 = vmatpush2.bf16.msra.mxu0 %v1167
        %1378 = vmatprep.subr.bf16.mxu0 %v1166
        %1379 = vmatpush2.bf16.msra.mxu0 %v1165
        %1380 = vmatprep.subr.bf16.mxu0 %v1164
        %1381 = vmatpush2.bf16.msra.mxu0 %v1163
        %1382 = vmatprep.mubr.bf16.mxu0 %v716
        %1383 = vmatmul.mubr.bf16.gmra.mxu0 %v715
        %v1384 = vpop.f32.mrf.mxu0
        %v1385 = vadd.f32 %v1342, %v1384
        %v1386 = vpop.f32.mrf.mxu0
        %v1387 = vadd.f32 %v1344, %v1386
        %v1388 = vpop.f32.mrf.mxu0
        %v1389 = vadd.f32 %v1346, %v1388
        %v1390 = vpop.f32.mrf.mxu0
        %v1391 = vadd.f32 %v1348, %v1390
        %1392 = vdwg.mxu0
        %1393 = vmatprep.subr.bf16.mxu0 %v1194
        %1394 = vmatpush1.bf16.msra.mxu0 %v1193
        %1395 = vmatprep.subr.bf16.mxu0 %v1192
        %1396 = vmatpush1.bf16.msra.mxu0 %v1191
        %1397 = vmatprep.subr.bf16.mxu0 %v1190
        %1398 = vmatpush1.bf16.msra.mxu0 %v1189
        %1399 = vmatprep.subr.bf16.mxu0 %v1188
        %1400 = vmatpush1.bf16.msra.mxu0 %v1187
        %1401 = vmatprep.subr.bf16.mxu0 %v1186
        %1402 = vmatpush1.bf16.msra.mxu0 %v1185
        %1403 = vmatprep.subr.bf16.mxu0 %v1184
        %1404 = vmatpush1.bf16.msra.mxu0 %v1183
        %1405 = vmatprep.subr.bf16.mxu0 %v1182
        %1406 = vmatpush1.bf16.msra.mxu0 %v1181
        %1407 = vmatprep.subr.bf16.mxu0 %v1180
        %1408 = vmatpush1.bf16.msra.mxu0 %v1179
        %1409 = vmatprep.subr.bf16.mxu0 %v1210
        %1410 = vmatpush2.bf16.msra.mxu0 %v1209
        %1411 = vmatprep.subr.bf16.mxu0 %v1208
        %1412 = vmatpush2.bf16.msra.mxu0 %v1207
        %1413 = vmatprep.subr.bf16.mxu0 %v1206
        %1414 = vmatpush2.bf16.msra.mxu0 %v1205
        %1415 = vmatprep.subr.bf16.mxu0 %v1204
        %1416 = vmatpush2.bf16.msra.mxu0 %v1203
        %1417 = vmatprep.subr.bf16.mxu0 %v1202
        %1418 = vmatpush2.bf16.msra.mxu0 %v1201
        %1419 = vmatprep.subr.bf16.mxu0 %v1200
        %1420 = vmatpush2.bf16.msra.mxu0 %v1199
        %1421 = vmatprep.subr.bf16.mxu0 %v1198
        %1422 = vmatpush2.bf16.msra.mxu0 %v1197
        %1423 = vmatprep.subr.bf16.mxu0 %v1196
        %1424 = vmatpush2.bf16.msra.mxu0 %v1195
        %1425 = vmatprep.mubr.bf16.mxu0 %v718
        %1426 = vmatmul.mubr.bf16.gmra.mxu0 %v717
        %v1427 = vpop.f32.mrf.mxu0
        %v1428 = vadd.f32 %v1385, %v1427
        %v1429 = vpop.f32.mrf.mxu0
        %v1430 = vadd.f32 %v1387, %v1429
        %v1431 = vpop.f32.mrf.mxu0
        %v1432 = vadd.f32 %v1389, %v1431
        %v1433 = vpop.f32.mrf.mxu0
        %v1434 = vadd.f32 %v1391, %v1433
        %1435 = vdwg.mxu0
        %v1436 = vmax.f32 %v1428, 0.0
        %v1437 = vmax.f32 %v1430, 0.0
        %v1438 = vmax.f32 %v1432, 0.0
        %v1439 = vmax.f32 %v1434, 0.0
        %v1440 = vpack.c.bf16 %v1438, %v1436
        %v1441 = vpack.c.bf16 %v1439, %v1437
        %v1442 = vld [vmem:[#allocation4] sm:$0xff]
        %v1443 = vld [vmem:[#allocation4 + $0x8] sm:$0xf]
        %v1444 = vld [vmem:[#allocation4 + $0xc] sm:$0xff]
        %v1445 = vld [vmem:[#allocation4 + $0x14] sm:$0xf]
        %v1446 = vld [vmem:[#allocation4 + $0x18] sm:$0xff]
        %v1447 = vld [vmem:[#allocation4 + $0x20] sm:$0xf]
        %v1448 = vld [vmem:[#allocation4 + $0x24] sm:$0xff]
        %v1449 = vld [vmem:[#allocation4 + $0x2c] sm:$0xf]
        %v1450 = vld [vmem:[#allocation4 + $0x30] sm:$0xff]
        %v1451 = vld [vmem:[#allocation4 + $0x38] sm:$0xf]
        %v1452 = vld [vmem:[#allocation4 + $0x3c] sm:$0xff]
        %v1453 = vld [vmem:[#allocation4 + $0x44] sm:$0xf]
        %v1454 = vld [vmem:[#allocation4 + $0x48] sm:$0xff]
        %v1455 = vld [vmem:[#allocation4 + $0x50] sm:$0xf]
        %v1456 = vld [vmem:[#allocation4 + $0x54] sm:$0xff]
        %v1457 = vld [vmem:[#allocation4 + $0x5c] sm:$0xf]
        %v1458 = vld [vmem:[#allocation4 + $0x60] sm:$0xff]
        %v1459 = vld [vmem:[#allocation4 + $0x68] sm:$0xf]
        %v1460 = vld [vmem:[#allocation4 + $0x6c] sm:$0xff]
        %v1461 = vld [vmem:[#allocation4 + $0x74] sm:$0xf]
        %v1462 = vld [vmem:[#allocation4 + $0x78] sm:$0xff]
        %v1463 = vld [vmem:[#allocation4 + $0x80] sm:$0xf]
        %v1464 = vld [vmem:[#allocation4 + $0x84] sm:$0xff]
        %v1465 = vld [vmem:[#allocation4 + $0x8c] sm:$0xf]
        %v1466 = vld [vmem:[#allocation4 + $0x90] sm:$0xff]
        %v1467 = vld [vmem:[#allocation4 + $0x98] sm:$0xf]
        %v1468 = vld [vmem:[#allocation4 + $0x9c] sm:$0xff]
        %v1469 = vld [vmem:[#allocation4 + $0xa4] sm:$0xf]
        %v1470 = vld [vmem:[#allocation4 + $0xa8] sm:$0xff]
        %v1471 = vld [vmem:[#allocation4 + $0xb0] sm:$0xf]
        %v1472 = vld [vmem:[#allocation4 + $0xb4] sm:$0xff]
        %v1473 = vld [vmem:[#allocation4 + $0xbc] sm:$0xf]
        %v1474 = vld [vmem:[#allocation4 + $0xc0] sm:$0xff]
        %v1475 = vld [vmem:[#allocation4 + $0xc8] sm:$0xf]
        %v1476 = vld [vmem:[#allocation4 + $0xcc] sm:$0xff]
        %v1477 = vld [vmem:[#allocation4 + $0xd4] sm:$0xf]
        %v1478 = vld [vmem:[#allocation4 + $0xd8] sm:$0xff]
        %v1479 = vld [vmem:[#allocation4 + $0xe0] sm:$0xf]
        %v1480 = vld [vmem:[#allocation4 + $0xe4] sm:$0xff]
        %v1481 = vld [vmem:[#allocation4 + $0xec] sm:$0xf]
        %v1482 = vld [vmem:[#allocation4 + $0xf0] sm:$0xff]
        %v1483 = vld [vmem:[#allocation4 + $0xf8] sm:$0xf]
        %v1484 = vld [vmem:[#allocation4 + $0xfc] sm:$0xff]
        %v1485 = vld [vmem:[#allocation4 + $0x104] sm:$0xf]
        %v1486 = vld [vmem:[#allocation4 + $0x108] sm:$0xff]
        %v1487 = vld [vmem:[#allocation4 + $0x110] sm:$0xf]
        %v1488 = vld [vmem:[#allocation4 + $0x114] sm:$0xff]
        %v1489 = vld [vmem:[#allocation4 + $0x11c] sm:$0xf]
        %v1490 = vld [vmem:[#allocation4 + $0x120] sm:$0xff]
        %v1491 = vld [vmem:[#allocation4 + $0x128] sm:$0xf]
        %v1492 = vld [vmem:[#allocation4 + $0x12c] sm:$0xff]
        %v1493 = vld [vmem:[#allocation4 + $0x134] sm:$0xf]
        %v1494 = vld [vmem:[#allocation4 + $0x138] sm:$0xff]
        %v1495 = vld [vmem:[#allocation4 + $0x140] sm:$0xf]
        %v1496 = vld [vmem:[#allocation4 + $0x144] sm:$0xff]
        %v1497 = vld [vmem:[#allocation4 + $0x14c] sm:$0xf]
        %v1498 = vld [vmem:[#allocation4 + $0x150] sm:$0xff]
        %v1499 = vld [vmem:[#allocation4 + $0x158] sm:$0xf]
        %v1500 = vld [vmem:[#allocation4 + $0x15c] sm:$0xff]
        %v1501 = vld [vmem:[#allocation4 + $0x164] sm:$0xf]
        %v1502 = vld [vmem:[#allocation4 + $0x168] sm:$0xff]
        %v1503 = vld [vmem:[#allocation4 + $0x170] sm:$0xf]
        %v1504 = vld [vmem:[#allocation4 + $0x174] sm:$0xff]
        %v1505 = vld [vmem:[#allocation4 + $0x17c] sm:$0xf]
        %v1506 = vld [vmem:[%s7] sm:$0x7]
        %v1508 = vlaneseq
        %v1509 = vshrl.u32 %v1508, 7
        %v1510 = vsub.s32 0, %v1509
        %v1511 = vrot.slane %v1506, %v1510
        %v1512 = vlaneseq
        %v1513 = vshrl.u32 %v1512, 7
        %v1514 = vsub.s32 1, %v1513
        %v1515 = vrot.slane %v1506, %v1514
        %v1516 = vlaneseq
        %v1517 = vshrl.u32 %v1516, 7
        %v1518 = vsub.s32 2, %v1517
        %v1519 = vrot.slane %v1506, %v1518
        %v1587 = vunpack.c.l.b16 %v1442
        %v1588 = vunpack.c.h.b16 %v1442
        %v1589 = vunpack.c.l.b16 %v1443
        %v1590 = vunpack.c.l.b16 %v1444
        %v1591 = vunpack.c.h.b16 %v1444
        %v1592 = vunpack.c.l.b16 %v1445
        %v1593 = vunpack.c.l.b16 %v1446
        %v1594 = vunpack.c.h.b16 %v1446
        %v1595 = vunpack.c.l.b16 %v1447
        %v1596 = vunpack.c.l.b16 %v1448
        %v1597 = vunpack.c.h.b16 %v1448
        %v1598 = vunpack.c.l.b16 %v1449
        %v1599 = vunpack.c.l.b16 %v1450
        %v1600 = vunpack.c.h.b16 %v1450
        %v1601 = vunpack.c.l.b16 %v1451
        %v1602 = vunpack.c.l.b16 %v1452
        %v1603 = vunpack.c.h.b16 %v1452
        %v1604 = vunpack.c.l.b16 %v1453
        %v1605 = vunpack.c.l.b16 %v1454
        %v1606 = vunpack.c.h.b16 %v1454
        %v1607 = vunpack.c.l.b16 %v1455
        %v1608 = vunpack.c.l.b16 %v1456
        %v1609 = vunpack.c.h.b16 %v1456
        %v1610 = vunpack.c.l.b16 %v1457
        %v1611 = vunpack.c.l.b16 %v1458
        %v1612 = vunpack.c.h.b16 %v1458
        %v1613 = vunpack.c.l.b16 %v1459
        %v1614 = vunpack.c.l.b16 %v1460
        %v1615 = vunpack.c.h.b16 %v1460
        %v1616 = vunpack.c.l.b16 %v1461
        %v1617 = vunpack.c.l.b16 %v1462
        %v1618 = vunpack.c.h.b16 %v1462
        %v1619 = vunpack.c.l.b16 %v1463
        %v1620 = vunpack.c.l.b16 %v1464
        %v1621 = vunpack.c.h.b16 %v1464
        %v1622 = vunpack.c.l.b16 %v1465
        %v1623 = vunpack.c.l.b16 %v1466
        %v1624 = vunpack.c.h.b16 %v1466
        %v1625 = vunpack.c.l.b16 %v1467
        %v1626 = vunpack.c.l.b16 %v1468
        %v1627 = vunpack.c.h.b16 %v1468
        %v1628 = vunpack.c.l.b16 %v1469
        %v1629 = vunpack.c.l.b16 %v1470
        %v1630 = vunpack.c.h.b16 %v1470
        %v1631 = vunpack.c.l.b16 %v1471
        %v1632 = vunpack.c.l.b16 %v1472
        %v1633 = vunpack.c.h.b16 %v1472
        %v1634 = vunpack.c.l.b16 %v1473
        %v1635 = vunpack.c.l.b16 %v1474
        %v1636 = vunpack.c.h.b16 %v1474
        %v1637 = vunpack.c.l.b16 %v1475
        %v1638 = vunpack.c.l.b16 %v1476
        %v1639 = vunpack.c.h.b16 %v1476
        %v1640 = vunpack.c.l.b16 %v1477
        %v1641 = vunpack.c.l.b16 %v1478
        %v1642 = vunpack.c.h.b16 %v1478
        %v1643 = vunpack.c.l.b16 %v1479
        %v1644 = vunpack.c.l.b16 %v1480
        %v1645 = vunpack.c.h.b16 %v1480
        %v1646 = vunpack.c.l.b16 %v1481
        %v1647 = vunpack.c.l.b16 %v1482
        %v1648 = vunpack.c.h.b16 %v1482
        %v1649 = vunpack.c.l.b16 %v1483
        %v1650 = vunpack.c.l.b16 %v1484
        %v1651 = vunpack.c.h.b16 %v1484
        %v1652 = vunpack.c.l.b16 %v1485
        %v1653 = vunpack.c.l.b16 %v1486
        %v1654 = vunpack.c.h.b16 %v1486
        %v1655 = vunpack.c.l.b16 %v1487
        %v1656 = vunpack.c.l.b16 %v1488
        %v1657 = vunpack.c.h.b16 %v1488
        %v1658 = vunpack.c.l.b16 %v1489
        %v1659 = vunpack.c.l.b16 %v1490
        %v1660 = vunpack.c.h.b16 %v1490
        %v1661 = vunpack.c.l.b16 %v1491
        %v1662 = vunpack.c.l.b16 %v1492
        %v1663 = vunpack.c.h.b16 %v1492
        %v1664 = vunpack.c.l.b16 %v1493
        %v1665 = vunpack.c.l.b16 %v1494
        %v1666 = vunpack.c.h.b16 %v1494
        %v1667 = vunpack.c.l.b16 %v1495
        %v1668 = vunpack.c.l.b16 %v1496
        %v1669 = vunpack.c.h.b16 %v1496
        %v1670 = vunpack.c.l.b16 %v1497
        %v1671 = vunpack.c.l.b16 %v1498
        %v1672 = vunpack.c.h.b16 %v1498
        %v1673 = vunpack.c.l.b16 %v1499
        %v1674 = vunpack.c.l.b16 %v1500
        %v1675 = vunpack.c.h.b16 %v1500
        %v1676 = vunpack.c.l.b16 %v1501
        %v1677 = vunpack.c.l.b16 %v1502
        %v1678 = vunpack.c.h.b16 %v1502
        %v1679 = vunpack.c.l.b16 %v1503
        %v1680 = vunpack.c.l.b16 %v1504
        %v1681 = vunpack.c.h.b16 %v1504
        %v1682 = vunpack.c.l.b16 %v1505
        %v1683 = vpack.c.b16 %v1590, %v1587
        %v1684 = vpack.c.b16 %v1591, %v1588
        %v1685 = vpack.c.b16 %v1592, %v1589
        %v1686 = vpack.c.b16 %v1596, %v1593
        %v1687 = vpack.c.b16 %v1597, %v1594
        %v1688 = vpack.c.b16 %v1598, %v1595
        %v1689 = vpack.c.b16 %v1602, %v1599
        %v1690 = vpack.c.b16 %v1603, %v1600
        %v1691 = vpack.c.b16 %v1604, %v1601
        %v1692 = vpack.c.b16 %v1608, %v1605
        %v1693 = vpack.c.b16 %v1609, %v1606
        %v1694 = vpack.c.b16 %v1610, %v1607
        %v1695 = vpack.c.b16 %v1614, %v1611
        %v1696 = vpack.c.b16 %v1615, %v1612
        %v1697 = vpack.c.b16 %v1616, %v1613
        %v1698 = vpack.c.b16 %v1620, %v1617
        %v1699 = vpack.c.b16 %v1621, %v1618
        %v1700 = vpack.c.b16 %v1622, %v1619
        %v1701 = vpack.c.b16 %v1626, %v1623
        %v1702 = vpack.c.b16 %v1627, %v1624
        %v1703 = vpack.c.b16 %v1628, %v1625
        %v1704 = vpack.c.b16 %v1632, %v1629
        %v1705 = vpack.c.b16 %v1633, %v1630
        %v1706 = vpack.c.b16 %v1634, %v1631
        %v1707 = vpack.c.b16 %v1638, %v1635
        %v1708 = vpack.c.b16 %v1639, %v1636
        %v1709 = vpack.c.b16 %v1640, %v1637
        %v1710 = vpack.c.b16 %v1644, %v1641
        %v1711 = vpack.c.b16 %v1645, %v1642
        %v1712 = vpack.c.b16 %v1646, %v1643
        %v1713 = vpack.c.b16 %v1650, %v1647
        %v1714 = vpack.c.b16 %v1651, %v1648
        %v1715 = vpack.c.b16 %v1652, %v1649
        %v1716 = vpack.c.b16 %v1656, %v1653
        %v1717 = vpack.c.b16 %v1657, %v1654
        %v1718 = vpack.c.b16 %v1658, %v1655
        %v1719 = vpack.c.b16 %v1662, %v1659
        %v1720 = vpack.c.b16 %v1663, %v1660
        %v1721 = vpack.c.b16 %v1664, %v1661
        %v1722 = vpack.c.b16 %v1668, %v1665
        %v1723 = vpack.c.b16 %v1669, %v1666
        %v1724 = vpack.c.b16 %v1670, %v1667
        %v1725 = vpack.c.b16 %v1674, %v1671
        %v1726 = vpack.c.b16 %v1675, %v1672
        %v1727 = vpack.c.b16 %v1676, %v1673
        %v1728 = vpack.c.b16 %v1680, %v1677
        %v1729 = vpack.c.b16 %v1681, %v1678
        %v1730 = vpack.c.b16 %v1682, %v1679
        %1779 = vmatprep.subr.bf16.mxu0 %v1705
        %1780 = vmatpush1.bf16.msra.mxu0 %v1704
        %1781 = vmatprep.subr.bf16.mxu0 %v1702
        %1782 = vmatpush1.bf16.msra.mxu0 %v1701
        %1783 = vmatprep.subr.bf16.mxu0 %v1699
        %1784 = vmatpush1.bf16.msra.mxu0 %v1698
        %1785 = vmatprep.subr.bf16.mxu0 %v1696
        %1786 = vmatpush1.bf16.msra.mxu0 %v1695
        %1787 = vmatprep.subr.bf16.mxu0 %v1693
        %1788 = vmatpush1.bf16.msra.mxu0 %v1692
        %1789 = vmatprep.subr.bf16.mxu0 %v1690
        %1790 = vmatpush1.bf16.msra.mxu0 %v1689
        %1791 = vmatprep.subr.bf16.mxu0 %v1687
        %1792 = vmatpush1.bf16.msra.mxu0 %v1686
        %1793 = vmatprep.subr.bf16.mxu0 %v1684
        %1794 = vmatpush1.bf16.msra.mxu0 %v1683
        %1795 = vmatprep.subr.bf16.mxu0 %v1729
        %1796 = vmatpush2.bf16.msra.mxu0 %v1728
        %1797 = vmatprep.subr.bf16.mxu0 %v1726
        %1798 = vmatpush2.bf16.msra.mxu0 %v1725
        %1799 = vmatprep.subr.bf16.mxu0 %v1723
        %1800 = vmatpush2.bf16.msra.mxu0 %v1722
        %1801 = vmatprep.subr.bf16.mxu0 %v1720
        %1802 = vmatpush2.bf16.msra.mxu0 %v1719
        %1803 = vmatprep.subr.bf16.mxu0 %v1717
        %1804 = vmatpush2.bf16.msra.mxu0 %v1716
        %1805 = vmatprep.subr.bf16.mxu0 %v1714
        %1806 = vmatpush2.bf16.msra.mxu0 %v1713
        %1807 = vmatprep.subr.bf16.mxu0 %v1711
        %1808 = vmatpush2.bf16.msra.mxu0 %v1710
        %1809 = vmatprep.subr.bf16.mxu0 %v1708
        %1810 = vmatpush2.bf16.msra.mxu0 %v1707
        %1811 = vmatprep.mubr.bf16.mxu0 %v1441
        %1812 = vmatmul.mubr.bf16.gmra.mxu0 %v1440
        %v1813 = vpop.f32.mrf.mxu0
        %v1814 = vadd.f32 %v1511, %v1813
        %v1815 = vpop.f32.mrf.mxu0
        %v1816 = vadd.f32 %v1515, %v1815
        %v1817 = vpop.f32.mrf.mxu0
        %v1818 = vadd.f32 %v1511, %v1817
        %v1819 = vpop.f32.mrf.mxu0
        %v1820 = vadd.f32 %v1515, %v1819
        %1821 = vdwg.mxu0
        %1822 = vmatprep.subr.bf16.mxu0 0
        %1823 = vmatpush1.bf16.msra.mxu0 %v1706
        %1824 = vmatprep.subr.bf16.mxu0 0
        %1825 = vmatpush1.bf16.msra.mxu0 %v1703
        %1826 = vmatprep.subr.bf16.mxu0 0
        %1827 = vmatpush1.bf16.msra.mxu0 %v1700
        %1828 = vmatprep.subr.bf16.mxu0 0
        %1829 = vmatpush1.bf16.msra.mxu0 %v1697
        %1830 = vmatprep.subr.bf16.mxu0 0
        %1831 = vmatpush1.bf16.msra.mxu0 %v1694
        %1832 = vmatprep.subr.bf16.mxu0 0
        %1833 = vmatpush1.bf16.msra.mxu0 %v1691
        %1834 = vmatprep.subr.bf16.mxu0 0
        %1835 = vmatpush1.bf16.msra.mxu0 %v1688
        %1836 = vmatprep.subr.bf16.mxu0 0
        %1837 = vmatpush1.bf16.msra.mxu0 %v1685
        %1838 = vmatprep.subr.bf16.mxu0 0
        %1839 = vmatpush2.bf16.msra.mxu0 %v1730
        %1840 = vmatprep.subr.bf16.mxu0 0
        %1841 = vmatpush2.bf16.msra.mxu0 %v1727
        %1842 = vmatprep.subr.bf16.mxu0 0
        %1843 = vmatpush2.bf16.msra.mxu0 %v1724
        %1844 = vmatprep.subr.bf16.mxu0 0
        %1845 = vmatpush2.bf16.msra.mxu0 %v1721
        %1846 = vmatprep.subr.bf16.mxu0 0
        %1847 = vmatpush2.bf16.msra.mxu0 %v1718
        %1848 = vmatprep.subr.bf16.mxu0 0
        %1849 = vmatpush2.bf16.msra.mxu0 %v1715
        %1850 = vmatprep.subr.bf16.mxu0 0
        %1851 = vmatpush2.bf16.msra.mxu0 %v1712
        %1852 = vmatprep.subr.bf16.mxu0 0
        %1853 = vmatpush2.bf16.msra.mxu0 %v1709
        %1854 = vmatprep.mubr.bf16.mxu0 %v1441
        %1855 = vmatmul.mubr.bf16.gmra.mxu0 %v1440
        %v1856 = vpop.f32.mrf.mxu0
        %v1857 = vadd.f32 %v1519, %v1856
        %v1858 = vpop.f32.mrf.mxu0
        %v1859 = vpop.f32.mrf.mxu0
        %v1860 = vadd.f32 %v1519, %v1859
        %v1861 = vpop.f32.mrf.mxu0
        %1862 = vdwg.mxu0
        %v1863 = vxor.u32 %v1816, 2147483648
        %v1864 = vxor.u32 %v1820, 2147483648
        %v1865 = vmul.f32 %v1863, 1.442695
        %v1866 = vpow.pop %v1865
        %v1867 = vmul.f32 %v1864, 1.442695
        %v1868 = vpow.pop %v1867
        %v1869 = vadd.f32 %v1866, 1.0
        %v1870 = vadd.f32 %v1868, 1.0
        %v1871 = vrcp.pop %v1869
        %v1872 = vmul.f32 1.0, %v1871
        %v1873 = vrcp.pop %v1870
        %v1874 = vmul.f32 1.0, %v1873
        %v1875 = vmul.f32 %v1814, %v1872
        %v1876 = vmul.f32 %v1818, %v1874
        %v1877 = vadd.f32 %v1875, %v1857
        %v1878 = vadd.f32 %v1876, %v1860
        %v1879 = vmax.f32 %v1877, 0.0
        %v1880 = vmax.f32 %v1878, 0.0
        %1881 = vst [vmem:[%s335] sm:$0xff] %v1879
        %1882 = vst [vmem:[%s335 + $0x8] sm:$0xff] %v1880
        %p1883 = scmp.lt.s32.totalorder %s21, 1
        %s1884 = scalar_select %p1883, %s21, 1
        %s1885 = smul.addr %s1884, 2
        %s1886 = smul.addr %s1885, 8
        %s1887 = scalar_lea.vmem %s8, %s1886
        // Predicated region
        $region61: #{_lambda_.1} parent=51 // pred_check
          %p1888 = pneg %p212
        $region62: #{_lambda_.1} parent=51 // pred_check_branch
          %1890 = sbr.rel (%p1888) target = $region64
        $region63: #{_lambda_.1} parent=51 // pred_region
          _
        $region64: #{_lambda_.1} parent=51 // pred_fallthru
          _
      $region52: #{_lambda_.1} parent=5 // pred_fallthru
        _
      %p1891 = scmp.le.s32.totalorder 2, %s16
      // Predicated region
      $region65: #{_lambda_.1} parent=5 // pred_check
        %p1892 = pneg %p1891
      $region66: #{_lambda_.1} parent=5 // pred_check_branch
        %1894 = sbr.rel (%p1892) target = $region68
      $region67: #{_lambda_.1} parent=5 // pred_region
        %s1895 = ssub.s32 %s16, 2
        // Predicated region
        $region69: #{_lambda_.1} parent=67 // pred_check
          %p1896 = pneg %p218
        $region70: #{_lambda_.1} parent=67 // pred_check_branch
          %1898 = sbr.rel (%p1896) target = $region72
        $region71: #{_lambda_.1} parent=67 // pred_region
          %p1899 = scmp.lt.s32.totalorder %s22, 1
          %s1900 = scalar_select %p1899, %s22, 1
          %s1901 = smul.addr %s1900, 2
          %s1902 = smul.addr %s1901, 8
          %s1903 = scalar_lea.vmem %s8, %s1902
        $region72: #{_lambda_.1} parent=67 // pred_fallthru
          _
      $region68: #{_lambda_.1} parent=5 // pred_fallthru
        _
    $region6: #{_lambda_.1} parent=1 // loop_footer
      %s20 = sadd.s32 1, %s16
    $region7: #{_lambda_.1} parent=1 // loop_footer_branch
      %15 = sbr.rel target = $region3
    $region8: #{_lambda_.1} parent=1 // loop_exit
      _
    %1904 = vsyncpa [#allocation3], 1
    %s1905 = scalar_lea.sflag [#allocation3], 1
    %1906 = vsyncpa %s1905, 1
    %1907 = vsyncpa [#allocation5], 1

</llo_original>
